<compile_context>
chip_gen: v7x
topology: tpu7x:2x2x1
jax: 0.10.0
libtpu: 0.0.40
codegen_flags: <defaults>
</compile_context>

<pallas_src>
import functools

import numpy as np
import jax
import jax.numpy as jnp
from jax.experimental import pallas as pl
from jax.experimental.pallas import tpu as pltpu


# ----------------------------- Pallas kernel --------------------------------

def _fused_forward_kernel(B, C, x_ref, wm_ref, bm_ref, w1_ref, w2_ref, w3_ref,
                          w4_ref, wn_ref, bn_ref, o_ref, mix_ref):
    """Whole NeuralConv3d forward on VMEM-resident data.

    x_ref  : (B*C, X*Y*Z)   flattened input (row = (b, c))
    wm_ref : (X*Y*Z, S)     Kronecker-fused M1*M2*M3 weight (pre-transposed)
    bm_ref : (1, S)         fused M-chain bias
    w*_ref : (C, C, S)      channel-mix weights, S = m1*m2*m3 on the lane axis
    wn_ref : (S, X*Y*Z)     Kronecker-fused N1*N2*N3 weight (pre-transposed)
    bn_ref : (1, X*Y*Z)     fused N-chain bias
    o_ref  : (B*C, X*Y*Z)   output
    mix_ref: (B*C, S)       VMEM scratch for channel-mix staging
    """
    # ---- M1 -> M2 -> M3 : one lane-dense MXU matmul (K = X*Y*Z, N = S) ----
    h = (jnp.dot(x_ref[...], wm_ref[...], preferred_element_type=jnp.float32)
         + bm_ref[...])                                        # (B*C, S)

    # ---- four chained channel mixes: out[b,o,s] = sum_i h[b,i,s]*w[i,o,s] ----
    # h stays in the sublane-dense (B*C, S) layout; each batch's C rows are
    # mixed with C broadcast-MACs and assembled in the VMEM scratch.
    for w_ref in (w1_ref, w2_ref, w3_ref, w4_ref):
        w = w_ref[...]                                         # (C, C, S)
        for b in range(B):
            xb = h[b * C:(b + 1) * C, :]                       # (C, S)
            acc = xb[0:1, :] * w[0]                            # (C, S)
            for i in range(1, C):
                acc = acc + xb[i:i + 1, :] * w[i]
            mix_ref[b * C:(b + 1) * C, :] = acc
        h = mix_ref[...]

    # ---- N1 -> N2 -> N3 : one lane-dense MXU matmul (K = S, N = X*Y*Z) ----
    o_ref[...] = (jnp.dot(h, wn_ref[...], preferred_element_type=jnp.float32)
                  + bn_ref[...]).astype(o_ref.dtype)


# ------------------------------- wrapper -------------------------------------

@jax.jit
def neural_conv3d_forward(x, p):
    """x: (b, c, X, Y, Z) with X=dims[0], Y=dims[1], Z=dims[2]+6."""
    B, C, X, Y, Z = x.shape
    m1 = p["M1_w"].shape[0]
    m2 = p["M2_w"].shape[0]
    m3 = p["M3_w"].shape[0]
    S = m1 * m2 * m3
    XYZ = X * Y * Z
    assert p["w1"].shape[0] == p["w1"].shape[1] == C, (
        "chained channel mixes require in_channels == out_channels")

    # Kronecker-fuse M1/M2/M3 into one (XYZ, S) weight (already transposed for
    # x @ wm) and fold the intermediate biases exactly:
    #   a3 = sum_xyz x*W1*W2*W3 + b1*S2*S3 + b2*S3 + b3
    wm = jnp.einsum("ax,by,cz->xyzabc",
                    p["M1_w"], p["M2_w"], p["M3_w"]).reshape(XYZ, S)
    s2 = jnp.sum(p["M2_w"], axis=1)                  # (m2,)  sum_y W2[m2, y]
    s3 = jnp.sum(p["M3_w"], axis=1)                  # (m3,)  sum_z W3[m3, z]
    bm = ((p["M1_b"][:, None, None] * s2[None, :, None]
           + p["M2_b"][None, :, None]) * s3[None, None, :]
          + p["M3_b"][None, None, :]).reshape(1, S)

    # Same fusion for N1/N2/N3: (S, XYZ) weight + fused bias.
    wn = jnp.einsum("xa,yb,zc->abcxyz",
                    p["N1_w"], p["N2_w"], p["N3_w"]).reshape(S, XYZ)
    t2 = jnp.sum(p["N2_w"], axis=1)                  # (Y,)   sum_m2 N2[y, m2]
    t3 = jnp.sum(p["N3_w"], axis=1)                  # (Z,)   sum_m3 N3[z, m3]
    bn = ((p["N1_b"][:, None, None] * t2[None, :, None]
           + p["N2_b"][None, :, None]) * t3[None, None, :]
          + p["N3_b"][None, None, :]).reshape(1, XYZ)

    # Channel-mix weights with (m1,m2,m3) flattened onto the lane axis.
    ws = [p[k].reshape(C, C, S) for k in ("w1", "w2", "w3", "w4")]

    # (B, C, X, Y, Z) -> (B*C, XYZ) is a free row-major view.
    x_flat = x.reshape(B * C, XYZ)

    # Everything fits in VMEM on every generation, so a single grid-less call
    # with whole-array blocks; megacore sharding is pointless at this size.
    # (If channels/modes are ever scaled up, add a grid + BlockSpecs over S/XYZ.)
    out_flat = pl.pallas_call(
        functools.partial(_fused_forward_kernel, B, C),
        out_shape=jax.ShapeDtypeStruct((B * C, XYZ), jnp.float32),
        scratch_shapes=[pltpu.VMEM((B * C, S), jnp.float32)],
    )(x_flat, wm, bm, *ws, wn, bn)

    return out_flat.reshape(B, C, X, Y, Z)


# ------------------------ pure-JAX reference (check) ------------------------

def reference_forward(x, p):
    P = jax.lax.Precision.HIGHEST

    def lin(t, w, b):
        return jnp.einsum("...k,nk->...n", t, w, precision=P) + b

    def R(inp, w):
        return jnp.einsum("bixyz,ioxyz->boxyz", inp, w, precision=P)

    xt = lin(jnp.transpose(x, (0, 1, 3, 4, 2)), p["M1_w"], p["M1_b"])
    x_ft = jnp.transpose(xt, (0, 1, 4, 2, 3))
    xt = lin(jnp.transpose(x_ft, (0, 1, 2, 4, 3)), p["M2_w"], p["M2_b"])
    x_ft = jnp.transpose(xt, (0, 1, 2, 4, 3))
    x_ft = lin(x_ft, p["M3_w"], p["M3_b"])
    out_ft = R(R(R(R(x_ft, p["w1"]), p["w2"]), p["w3"]), p["w4"])
    xt = lin(jnp.transpose(out_ft, (0, 1, 3, 4, 2)), p["N1_w"], p["N1_b"])
    xo = jnp.transpose(xt, (0, 1, 4, 2, 3))
    xt = lin(jnp.transpose(xo, (0, 1, 2, 4, 3)), p["N2_w"], p["N2_b"])
    xo = jnp.transpose(xt, (0, 1, 2, 4, 3))
    return lin(xo, p["N3_w"], p["N3_b"])


# --------------------------------- main --------------------------------------

if __name__ == "__main__":
    # module config (in_channels must equal out_channels for the chained R calls)
    in_channels = out_channels = 4
    dims = (8, 8, 10)               # -> X=8, Y=8, Z=dims[2]+6=16
    modes1, modes2, modes3 = 4, 4, 8
    batch = 2
    X, Y, Z = dims[0], dims[1], dims[2] + 6

    key = jax.random.PRNGKey(0)
    ks = jax.random.split(key, 18)
    scale = 1.0 / (in_channels * out_channels)

    def lin_init(kw, kb, out_f, in_f):
        bound = 1.0 / np.sqrt(in_f)
        w = jax.random.uniform(kw, (out_f, in_f), jnp.float32, -bound, bound)
        b = jax.random.uniform(kb, (out_f,), jnp.float32, -bound, bound)
        return w, b

    params = {}
    for i, name in enumerate(("w1", "w2", "w3", "w4")):
        params[name] = scale * jax.random.uniform(
            ks[i], (in_channels, out_channels, modes1, modes2, modes3),
            jnp.float32)
    params["M1_w"], params["M1_b"] = lin_init(ks[4], ks[5], modes1, dims[0])
    params["M2_w"], params["M2_b"] = lin_init(ks[6], ks[7], modes2, dims[1])
    params["M3_w"], params["M3_b"] = lin_init(ks[8], ks[9], modes3, dims[2] + 6)
    params["N1_w"], params["N1_b"] = lin_init(ks[10], ks[11], dims[0], modes1)
    params["N2_w"], params["N2_b"] = lin_init(ks[12], ks[13], dims[1], modes2)
    params["N3_w"], params["N3_b"] = lin_init(ks[14], ks[15], dims[2] + 6, modes3)

    x = jax.random.normal(ks[16], (batch, in_channels, X, Y, Z), jnp.float32)

    out = jax.block_until_ready(neural_conv3d_forward(x, params))
    ref = jax.block_until_ready(reference_forward(x, params))

    assert out.shape == (batch, out_channels, X, Y, Z), out.shape
    max_err = float(jnp.max(jnp.abs(out - ref)))
    assert jnp.allclose(out, ref, rtol=1e-4, atol=1e-4), max_err
    print("KERNEL_OK")
</pallas_src>

<mosaic_0001>
module attributes {stable_mosaic.version = 11 : i64} {
  func.func @_fused_forward_kernel(%arg0: memref<8x1024xf32, #tpu.memory_space<vmem>>, %arg1: memref<1024x128xf32, #tpu.memory_space<vmem>>, %arg2: memref<1x128xf32, #tpu.memory_space<vmem>>, %arg3: memref<4x4x128xf32, #tpu.memory_space<vmem>>, %arg4: memref<4x4x128xf32, #tpu.memory_space<vmem>>, %arg5: memref<4x4x128xf32, #tpu.memory_space<vmem>>, %arg6: memref<4x4x128xf32, #tpu.memory_space<vmem>>, %arg7: memref<128x1024xf32, #tpu.memory_space<vmem>>, %arg8: memref<1x1024xf32, #tpu.memory_space<vmem>>, %arg9: memref<8x1024xf32, #tpu.memory_space<vmem>>, %arg10: memref<8x128xf32, #tpu.memory_space<vmem>>) attributes {dimension_semantics = [], scalar_prefetch = 0 : i64, scratch_operands = 1 : i64, tpu.core_type = #tpu.core_type<tc>} {
    %c0 = arith.constant 0 : index
    %c0_0 = arith.constant 0 : index
    %0 = vector.load %arg0[%c0, %c0_0] : memref<8x1024xf32, #tpu.memory_space<vmem>>, vector<8x1024xf32>
    %c0_1 = arith.constant 0 : index
    %c0_2 = arith.constant 0 : index
    %1 = vector.load %arg1[%c0_1, %c0_2] : memref<1024x128xf32, #tpu.memory_space<vmem>>, vector<1024x128xf32>
    %cst = arith.constant dense<0.000000e+00> : vector<8x128xf32>
    %2 = tpu.matmul %0, %1, %cst {dimension_numbers = #tpu.dot_dimension_numbers<[1], [0], [0], [1], [0, 0, 1, 1], [], []>} : vector<8x1024xf32>, vector<1024x128xf32>, vector<8x128xf32> -> vector<8x128xf32>
    %c0_3 = arith.constant 0 : index
    %c0_4 = arith.constant 0 : index
    %3 = vector.load %arg2[%c0_3, %c0_4] : memref<1x128xf32, #tpu.memory_space<vmem>>, vector<1x128xf32>
    %4 = vector.broadcast %3 : vector<1x128xf32> to vector<8x128xf32>
    %5 = arith.addf %2, %4 : vector<8x128xf32>
    %c0_5 = arith.constant 0 : index
    %c0_6 = arith.constant 0 : index
    %c0_7 = arith.constant 0 : index
    %6 = vector.load %arg3[%c0_5, %c0_6, %c0_7] : memref<4x4x128xf32, #tpu.memory_space<vmem>>, vector<4x4x128xf32>
    %7 = vector.extract_strided_slice %5 {offsets = [0, 0], sizes = [4, 128], strides = [1, 1]} : vector<8x128xf32> to vector<4x128xf32>
    %8 = vector.extract_strided_slice %7 {offsets = [0, 0], sizes = [1, 128], strides = [1, 1]} : vector<4x128xf32> to vector<1x128xf32>
    %9 = vector.extract_strided_slice %6 {offsets = [0, 0, 0], sizes = [1, 4, 128], strides = [1, 1, 1]} : vector<4x4x128xf32> to vector<1x4x128xf32>
    %10 = vector.shape_cast %9 : vector<1x4x128xf32> to vector<4x128xf32>
    %11 = vector.broadcast %8 : vector<1x128xf32> to vector<4x128xf32>
    %12 = arith.mulf %11, %10 : vector<4x128xf32>
    %13 = vector.extract_strided_slice %7 {offsets = [1, 0], sizes = [1, 128], strides = [1, 1]} : vector<4x128xf32> to vector<1x128xf32>
    %14 = vector.extract_strided_slice %6 {offsets = [1, 0, 0], sizes = [1, 4, 128], strides = [1, 1, 1]} : vector<4x4x128xf32> to vector<1x4x128xf32>
    %15 = vector.shape_cast %14 : vector<1x4x128xf32> to vector<4x128xf32>
    %16 = vector.broadcast %13 : vector<1x128xf32> to vector<4x128xf32>
    %17 = arith.mulf %16, %15 : vector<4x128xf32>
    %18 = arith.addf %12, %17 : vector<4x128xf32>
    %19 = vector.extract_strided_slice %7 {offsets = [2, 0], sizes = [1, 128], strides = [1, 1]} : vector<4x128xf32> to vector<1x128xf32>
    %20 = vector.extract_strided_slice %6 {offsets = [2, 0, 0], sizes = [1, 4, 128], strides = [1, 1, 1]} : vector<4x4x128xf32> to vector<1x4x128xf32>
    %21 = vector.shape_cast %20 : vector<1x4x128xf32> to vector<4x128xf32>
    %22 = vector.broadcast %19 : vector<1x128xf32> to vector<4x128xf32>
    %23 = arith.mulf %22, %21 : vector<4x128xf32>
    %24 = arith.addf %18, %23 : vector<4x128xf32>
    %25 = vector.extract_strided_slice %7 {offsets = [3, 0], sizes = [1, 128], strides = [1, 1]} : vector<4x128xf32> to vector<1x128xf32>
    %26 = vector.extract_strided_slice %6 {offsets = [3, 0, 0], sizes = [1, 4, 128], strides = [1, 1, 1]} : vector<4x4x128xf32> to vector<1x4x128xf32>
    %27 = vector.shape_cast %26 : vector<1x4x128xf32> to vector<4x128xf32>
    %28 = vector.broadcast %25 : vector<1x128xf32> to vector<4x128xf32>
    %29 = arith.mulf %28, %27 : vector<4x128xf32>
    %30 = arith.addf %24, %29 : vector<4x128xf32>
    %c0_8 = arith.constant 0 : index
    %c0_9 = arith.constant 0 : index
    %31 = vector.load %arg10[%c0_8, %c0_9] : memref<8x128xf32, #tpu.memory_space<vmem>>, vector<4x128xf32>
    tpu.vector_store %arg10[%c0_8, %c0_9], %30 {strides = array<i32>} : memref<8x128xf32, #tpu.memory_space<vmem>>, vector<4x128xf32>,
    %32 = vector.extract_strided_slice %5 {offsets = [4, 0], sizes = [4, 128], strides = [1, 1]} : vector<8x128xf32> to vector<4x128xf32>
    %33 = vector.extract_strided_slice %32 {offsets = [0, 0], sizes = [1, 128], strides = [1, 1]} : vector<4x128xf32> to vector<1x128xf32>
    %34 = vector.extract_strided_slice %6 {offsets = [0, 0, 0], sizes = [1, 4, 128], strides = [1, 1, 1]} : vector<4x4x128xf32> to vector<1x4x128xf32>
    %35 = vector.shape_cast %34 : vector<1x4x128xf32> to vector<4x128xf32>
    %36 = vector.broadcast %33 : vector<1x128xf32> to vector<4x128xf32>
    %37 = arith.mulf %36, %35 : vector<4x128xf32>
    %38 = vector.extract_strided_slice %32 {offsets = [1, 0], sizes = [1, 128], strides = [1, 1]} : vector<4x128xf32> to vector<1x128xf32>
    %39 = vector.extract_strided_slice %6 {offsets = [1, 0, 0], sizes = [1, 4, 128], strides = [1, 1, 1]} : vector<4x4x128xf32> to vector<1x4x128xf32>
    %40 = vector.shape_cast %39 : vector<1x4x128xf32> to vector<4x128xf32>
    %41 = vector.broadcast %38 : vector<1x128xf32> to vector<4x128xf32>
    %42 = arith.mulf %41, %40 : vector<4x128xf32>
    %43 = arith.addf %37, %42 : vector<4x128xf32>
    %44 = vector.extract_strided_slice %32 {offsets = [2, 0], sizes = [1, 128], strides = [1, 1]} : vector<4x128xf32> to vector<1x128xf32>
    %45 = vector.extract_strided_slice %6 {offsets = [2, 0, 0], sizes = [1, 4, 128], strides = [1, 1, 1]} : vector<4x4x128xf32> to vector<1x4x128xf32>
    %46 = vector.shape_cast %45 : vector<1x4x128xf32> to vector<4x128xf32>
    %47 = vector.broadcast %44 : vector<1x128xf32> to vector<4x128xf32>
    %48 = arith.mulf %47, %46 : vector<4x128xf32>
    %49 = arith.addf %43, %48 : vector<4x128xf32>
    %50 = vector.extract_strided_slice %32 {offsets = [3, 0], sizes = [1, 128], strides = [1, 1]} : vector<4x128xf32> to vector<1x128xf32>
    %51 = vector.extract_strided_slice %6 {offsets = [3, 0, 0], sizes = [1, 4, 128], strides = [1, 1, 1]} : vector<4x4x128xf32> to vector<1x4x128xf32>
    %52 = vector.shape_cast %51 : vector<1x4x128xf32> to vector<4x128xf32>
    %53 = vector.broadcast %50 : vector<1x128xf32> to vector<4x128xf32>
    %54 = arith.mulf %53, %52 : vector<4x128xf32>
    %55 = arith.addf %49, %54 : vector<4x128xf32>
    %c4 = arith.constant 4 : index
    %c0_10 = arith.constant 0 : index
    %56 = vector.load %arg10[%c4, %c0_10] : memref<8x128xf32, #tpu.memory_space<vmem>>, vector<4x128xf32>
    tpu.vector_store %arg10[%c4, %c0_10], %55 {strides = array<i32>} : memref<8x128xf32, #tpu.memory_space<vmem>>, vector<4x128xf32>,
    %c0_11 = arith.constant 0 : index
    %c0_12 = arith.constant 0 : index
    %57 = vector.load %arg10[%c0_11, %c0_12] : memref<8x128xf32, #tpu.memory_space<vmem>>, vector<8x128xf32>
    %c0_13 = arith.constant 0 : index
    %c0_14 = arith.constant 0 : index
    %c0_15 = arith.constant 0 : index
    %58 = vector.load %arg4[%c0_13, %c0_14, %c0_15] : memref<4x4x128xf32, #tpu.memory_space<vmem>>, vector<4x4x128xf32>
    %59 = vector.extract_strided_slice %57 {offsets = [0, 0], sizes = [4, 128], strides = [1, 1]} : vector<8x128xf32> to vector<4x128xf32>
    %60 = vector.extract_strided_slice %59 {offsets = [0, 0], sizes = [1, 128], strides = [1, 1]} : vector<4x128xf32> to vector<1x128xf32>
    %61 = vector.extract_strided_slice %58 {offsets = [0, 0, 0], sizes = [1, 4, 128], strides = [1, 1, 1]} : vector<4x4x128xf32> to vector<1x4x128xf32>
    %62 = vector.shape_cast %61 : vector<1x4x128xf32> to vector<4x128xf32>
    %63 = vector.broadcast %60 : vector<1x128xf32> to vector<4x128xf32>
    %64 = arith.mulf %63, %62 : vector<4x128xf32>
    %65 = vector.extract_strided_slice %59 {offsets = [1, 0], sizes = [1, 128], strides = [1, 1]} : vector<4x128xf32> to vector<1x128xf32>
    %66 = vector.extract_strided_slice %58 {offsets = [1, 0, 0], sizes = [1, 4, 128], strides = [1, 1, 1]} : vector<4x4x128xf32> to vector<1x4x128xf32>
    %67 = vector.shape_cast %66 : vector<1x4x128xf32> to vector<4x128xf32>
    %68 = vector.broadcast %65 : vector<1x128xf32> to vector<4x128xf32>
    %69 = arith.mulf %68, %67 : vector<4x128xf32>
    %70 = arith.addf %64, %69 : vector<4x128xf32>
    %71 = vector.extract_strided_slice %59 {offsets = [2, 0], sizes = [1, 128], strides = [1, 1]} : vector<4x128xf32> to vector<1x128xf32>
    %72 = vector.extract_strided_slice %58 {offsets = [2, 0, 0], sizes = [1, 4, 128], strides = [1, 1, 1]} : vector<4x4x128xf32> to vector<1x4x128xf32>
    %73 = vector.shape_cast %72 : vector<1x4x128xf32> to vector<4x128xf32>
    %74 = vector.broadcast %71 : vector<1x128xf32> to vector<4x128xf32>
    %75 = arith.mulf %74, %73 : vector<4x128xf32>
    %76 = arith.addf %70, %75 : vector<4x128xf32>
    %77 = vector.extract_strided_slice %59 {offsets = [3, 0], sizes = [1, 128], strides = [1, 1]} : vector<4x128xf32> to vector<1x128xf32>
    %78 = vector.extract_strided_slice %58 {offsets = [3, 0, 0], sizes = [1, 4, 128], strides = [1, 1, 1]} : vector<4x4x128xf32> to vector<1x4x128xf32>
    %79 = vector.shape_cast %78 : vector<1x4x128xf32> to vector<4x128xf32>
    %80 = vector.broadcast %77 : vector<1x128xf32> to vector<4x128xf32>
    %81 = arith.mulf %80, %79 : vector<4x128xf32>
    %82 = arith.addf %76, %81 : vector<4x128xf32>
    %c0_16 = arith.constant 0 : index
    %c0_17 = arith.constant 0 : index
    %83 = vector.load %arg10[%c0_16, %c0_17] : memref<8x128xf32, #tpu.memory_space<vmem>>, vector<4x128xf32>
    tpu.vector_store %arg10[%c0_16, %c0_17], %82 {strides = array<i32>} : memref<8x128xf32, #tpu.memory_space<vmem>>, vector<4x128xf32>,
    %84 = vector.extract_strided_slice %57 {offsets = [4, 0], sizes = [4, 128], strides = [1, 1]} : vector<8x128xf32> to vector<4x128xf32>
    %85 = vector.extract_strided_slice %84 {offsets = [0, 0], sizes = [1, 128], strides = [1, 1]} : vector<4x128xf32> to vector<1x128xf32>
    %86 = vector.extract_strided_slice %58 {offsets = [0, 0, 0], sizes = [1, 4, 128], strides = [1, 1, 1]} : vector<4x4x128xf32> to vector<1x4x128xf32>
    %87 = vector.shape_cast %86 : vector<1x4x128xf32> to vector<4x128xf32>
    %88 = vector.broadcast %85 : vector<1x128xf32> to vector<4x128xf32>
    %89 = arith.mulf %88, %87 : vector<4x128xf32>
    %90 = vector.extract_strided_slice %84 {offsets = [1, 0], sizes = [1, 128], strides = [1, 1]} : vector<4x128xf32> to vector<1x128xf32>
    %91 = vector.extract_strided_slice %58 {offsets = [1, 0, 0], sizes = [1, 4, 128], strides = [1, 1, 1]} : vector<4x4x128xf32> to vector<1x4x128xf32>
    %92 = vector.shape_cast %91 : vector<1x4x128xf32> to vector<4x128xf32>
    %93 = vector.broadcast %90 : vector<1x128xf32> to vector<4x128xf32>
    %94 = arith.mulf %93, %92 : vector<4x128xf32>
    %95 = arith.addf %89, %94 : vector<4x128xf32>
    %96 = vector.extract_strided_slice %84 {offsets = [2, 0], sizes = [1, 128], strides = [1, 1]} : vector<4x128xf32> to vector<1x128xf32>
    %97 = vector.extract_strided_slice %58 {offsets = [2, 0, 0], sizes = [1, 4, 128], strides = [1, 1, 1]} : vector<4x4x128xf32> to vector<1x4x128xf32>
    %98 = vector.shape_cast %97 : vector<1x4x128xf32> to vector<4x128xf32>
    %99 = vector.broadcast %96 : vector<1x128xf32> to vector<4x128xf32>
    %100 = arith.mulf %99, %98 : vector<4x128xf32>
    %101 = arith.addf %95, %100 : vector<4x128xf32>
    %102 = vector.extract_strided_slice %84 {offsets = [3, 0], sizes = [1, 128], strides = [1, 1]} : vector<4x128xf32> to vector<1x128xf32>
    %103 = vector.extract_strided_slice %58 {offsets = [3, 0, 0], sizes = [1, 4, 128], strides = [1, 1, 1]} : vector<4x4x128xf32> to vector<1x4x128xf32>
    %104 = vector.shape_cast %103 : vector<1x4x128xf32> to vector<4x128xf32>
    %105 = vector.broadcast %102 : vector<1x128xf32> to vector<4x128xf32>
    %106 = arith.mulf %105, %104 : vector<4x128xf32>
    %107 = arith.addf %101, %106 : vector<4x128xf32>
    %c4_18 = arith.constant 4 : index
    %c0_19 = arith.constant 0 : index
    %108 = vector.load %arg10[%c4_18, %c0_19] : memref<8x128xf32, #tpu.memory_space<vmem>>, vector<4x128xf32>
    tpu.vector_store %arg10[%c4_18, %c0_19], %107 {strides = array<i32>} : memref<8x128xf32, #tpu.memory_space<vmem>>, vector<4x128xf32>,
    %c0_20 = arith.constant 0 : index
    %c0_21 = arith.constant 0 : index
    %109 = vector.load %arg10[%c0_20, %c0_21] : memref<8x128xf32, #tpu.memory_space<vmem>>, vector<8x128xf32>
    %c0_22 = arith.constant 0 : index
    %c0_23 = arith.constant 0 : index
    %c0_24 = arith.constant 0 : index
    %110 = vector.load %arg5[%c0_22, %c0_23, %c0_24] : memref<4x4x128xf32, #tpu.memory_space<vmem>>, vector<4x4x128xf32>
    %111 = vector.extract_strided_slice %109 {offsets = [0, 0], sizes = [4, 128], strides = [1, 1]} : vector<8x128xf32> to vector<4x128xf32>
    %112 = vector.extract_strided_slice %111 {offsets = [0, 0], sizes = [1, 128], strides = [1, 1]} : vector<4x128xf32> to vector<1x128xf32>
    %113 = vector.extract_strided_slice %110 {offsets = [0, 0, 0], sizes = [1, 4, 128], strides = [1, 1, 1]} : vector<4x4x128xf32> to vector<1x4x128xf32>
    %114 = vector.shape_cast %113 : vector<1x4x128xf32> to vector<4x128xf32>
    %115 = vector.broadcast %112 : vector<1x128xf32> to vector<4x128xf32>
    %116 = arith.mulf %115, %114 : vector<4x128xf32>
    %117 = vector.extract_strided_slice %111 {offsets = [1, 0], sizes = [1, 128], strides = [1, 1]} : vector<4x128xf32> to vector<1x128xf32>
    %118 = vector.extract_strided_slice %110 {offsets = [1, 0, 0], sizes = [1, 4, 128], strides = [1, 1, 1]} : vector<4x4x128xf32> to vector<1x4x128xf32>
    %119 = vector.shape_cast %118 : vector<1x4x128xf32> to vector<4x128xf32>
    %120 = vector.broadcast %117 : vector<1x128xf32> to vector<4x128xf32>
    %121 = arith.mulf %120, %119 : vector<4x128xf32>
    %122 = arith.addf %116, %121 : vector<4x128xf32>
    %123 = vector.extract_strided_slice %111 {offsets = [2, 0], sizes = [1, 128], strides = [1, 1]} : vector<4x128xf32> to vector<1x128xf32>
    %124 = vector.extract_strided_slice %110 {offsets = [2, 0, 0], sizes = [1, 4, 128], strides = [1, 1, 1]} : vector<4x4x128xf32> to vector<1x4x128xf32>
    %125 = vector.shape_cast %124 : vector<1x4x128xf32> to vector<4x128xf32>
    %126 = vector.broadcast %123 : vector<1x128xf32> to vector<4x128xf32>
    %127 = arith.mulf %126, %125 : vector<4x128xf32>
    %128 = arith.addf %122, %127 : vector<4x128xf32>
    %129 = vector.extract_strided_slice %111 {offsets = [3, 0], sizes = [1, 128], strides = [1, 1]} : vector<4x128xf32> to vector<1x128xf32>
    %130 = vector.extract_strided_slice %110 {offsets = [3, 0, 0], sizes = [1, 4, 128], strides = [1, 1, 1]} : vector<4x4x128xf32> to vector<1x4x128xf32>
    %131 = vector.shape_cast %130 : vector<1x4x128xf32> to vector<4x128xf32>
    %132 = vector.broadcast %129 : vector<1x128xf32> to vector<4x128xf32>
    %133 = arith.mulf %132, %131 : vector<4x128xf32>
    %134 = arith.addf %128, %133 : vector<4x128xf32>
    %c0_25 = arith.constant 0 : index
    %c0_26 = arith.constant 0 : index
    %135 = vector.load %arg10[%c0_25, %c0_26] : memref<8x128xf32, #tpu.memory_space<vmem>>, vector<4x128xf32>
    tpu.vector_store %arg10[%c0_25, %c0_26], %134 {strides = array<i32>} : memref<8x128xf32, #tpu.memory_space<vmem>>, vector<4x128xf32>,
    %136 = vector.extract_strided_slice %109 {offsets = [4, 0], sizes = [4, 128], strides = [1, 1]} : vector<8x128xf32> to vector<4x128xf32>
    %137 = vector.extract_strided_slice %136 {offsets = [0, 0], sizes = [1, 128], strides = [1, 1]} : vector<4x128xf32> to vector<1x128xf32>
    %138 = vector.extract_strided_slice %110 {offsets = [0, 0, 0], sizes = [1, 4, 128], strides = [1, 1, 1]} : vector<4x4x128xf32> to vector<1x4x128xf32>
    %139 = vector.shape_cast %138 : vector<1x4x128xf32> to vector<4x128xf32>
    %140 = vector.broadcast %137 : vector<1x128xf32> to vector<4x128xf32>
    %141 = arith.mulf %140, %139 : vector<4x128xf32>
    %142 = vector.extract_strided_slice %136 {offsets = [1, 0], sizes = [1, 128], strides = [1, 1]} : vector<4x128xf32> to vector<1x128xf32>
    %143 = vector.extract_strided_slice %110 {offsets = [1, 0, 0], sizes = [1, 4, 128], strides = [1, 1, 1]} : vector<4x4x128xf32> to vector<1x4x128xf32>
    %144 = vector.shape_cast %143 : vector<1x4x128xf32> to vector<4x128xf32>
    %145 = vector.broadcast %142 : vector<1x128xf32> to vector<4x128xf32>
    %146 = arith.mulf %145, %144 : vector<4x128xf32>
    %147 = arith.addf %141, %146 : vector<4x128xf32>
    %148 = vector.extract_strided_slice %136 {offsets = [2, 0], sizes = [1, 128], strides = [1, 1]} : vector<4x128xf32> to vector<1x128xf32>
    %149 = vector.extract_strided_slice %110 {offsets = [2, 0, 0], sizes = [1, 4, 128], strides = [1, 1, 1]} : vector<4x4x128xf32> to vector<1x4x128xf32>
    %150 = vector.shape_cast %149 : vector<1x4x128xf32> to vector<4x128xf32>
    %151 = vector.broadcast %148 : vector<1x128xf32> to vector<4x128xf32>
    %152 = arith.mulf %151, %150 : vector<4x128xf32>
    %153 = arith.addf %147, %152 : vector<4x128xf32>
    %154 = vector.extract_strided_slice %136 {offsets = [3, 0], sizes = [1, 128], strides = [1, 1]} : vector<4x128xf32> to vector<1x128xf32>
    %155 = vector.extract_strided_slice %110 {offsets = [3, 0, 0], sizes = [1, 4, 128], strides = [1, 1, 1]} : vector<4x4x128xf32> to vector<1x4x128xf32>
    %156 = vector.shape_cast %155 : vector<1x4x128xf32> to vector<4x128xf32>
    %157 = vector.broadcast %154 : vector<1x128xf32> to vector<4x128xf32>
    %158 = arith.mulf %157, %156 : vector<4x128xf32>
    %159 = arith.addf %153, %158 : vector<4x128xf32>
    %c4_27 = arith.constant 4 : index
    %c0_28 = arith.constant 0 : index
    %160 = vector.load %arg10[%c4_27, %c0_28] : memref<8x128xf32, #tpu.memory_space<vmem>>, vector<4x128xf32>
    tpu.vector_store %arg10[%c4_27, %c0_28], %159 {strides = array<i32>} : memref<8x128xf32, #tpu.memory_space<vmem>>, vector<4x128xf32>,
    %c0_29 = arith.constant 0 : index
    %c0_30 = arith.constant 0 : index
    %161 = vector.load %arg10[%c0_29, %c0_30] : memref<8x128xf32, #tpu.memory_space<vmem>>, vector<8x128xf32>
    %c0_31 = arith.constant 0 : index
    %c0_32 = arith.constant 0 : index
    %c0_33 = arith.constant 0 : index
    %162 = vector.load %arg6[%c0_31, %c0_32, %c0_33] : memref<4x4x128xf32, #tpu.memory_space<vmem>>, vector<4x4x128xf32>
    %163 = vector.extract_strided_slice %161 {offsets = [0, 0], sizes = [4, 128], strides = [1, 1]} : vector<8x128xf32> to vector<4x128xf32>
    %164 = vector.extract_strided_slice %163 {offsets = [0, 0], sizes = [1, 128], strides = [1, 1]} : vector<4x128xf32> to vector<1x128xf32>
    %165 = vector.extract_strided_slice %162 {offsets = [0, 0, 0], sizes = [1, 4, 128], strides = [1, 1, 1]} : vector<4x4x128xf32> to vector<1x4x128xf32>
    %166 = vector.shape_cast %165 : vector<1x4x128xf32> to vector<4x128xf32>
    %167 = vector.broadcast %164 : vector<1x128xf32> to vector<4x128xf32>
    %168 = arith.mulf %167, %166 : vector<4x128xf32>
    %169 = vector.extract_strided_slice %163 {offsets = [1, 0], sizes = [1, 128], strides = [1, 1]} : vector<4x128xf32> to vector<1x128xf32>
    %170 = vector.extract_strided_slice %162 {offsets = [1, 0, 0], sizes = [1, 4, 128], strides = [1, 1, 1]} : vector<4x4x128xf32> to vector<1x4x128xf32>
    %171 = vector.shape_cast %170 : vector<1x4x128xf32> to vector<4x128xf32>
    %172 = vector.broadcast %169 : vector<1x128xf32> to vector<4x128xf32>
    %173 = arith.mulf %172, %171 : vector<4x128xf32>
    %174 = arith.addf %168, %173 : vector<4x128xf32>
    %175 = vector.extract_strided_slice %163 {offsets = [2, 0], sizes = [1, 128], strides = [1, 1]} : vector<4x128xf32> to vector<1x128xf32>
    %176 = vector.extract_strided_slice %162 {offsets = [2, 0, 0], sizes = [1, 4, 128], strides = [1, 1, 1]} : vector<4x4x128xf32> to vector<1x4x128xf32>
    %177 = vector.shape_cast %176 : vector<1x4x128xf32> to vector<4x128xf32>
    %178 = vector.broadcast %175 : vector<1x128xf32> to vector<4x128xf32>
    %179 = arith.mulf %178, %177 : vector<4x128xf32>
    %180 = arith.addf %174, %179 : vector<4x128xf32>
    %181 = vector.extract_strided_slice %163 {offsets = [3, 0], sizes = [1, 128], strides = [1, 1]} : vector<4x128xf32> to vector<1x128xf32>
    %182 = vector.extract_strided_slice %162 {offsets = [3, 0, 0], sizes = [1, 4, 128], strides = [1, 1, 1]} : vector<4x4x128xf32> to vector<1x4x128xf32>
    %183 = vector.shape_cast %182 : vector<1x4x128xf32> to vector<4x128xf32>
    %184 = vector.broadcast %181 : vector<1x128xf32> to vector<4x128xf32>
    %185 = arith.mulf %184, %183 : vector<4x128xf32>
    %186 = arith.addf %180, %185 : vector<4x128xf32>
    %c0_34 = arith.constant 0 : index
    %c0_35 = arith.constant 0 : index
    %187 = vector.load %arg10[%c0_34, %c0_35] : memref<8x128xf32, #tpu.memory_space<vmem>>, vector<4x128xf32>
    tpu.vector_store %arg10[%c0_34, %c0_35], %186 {strides = array<i32>} : memref<8x128xf32, #tpu.memory_space<vmem>>, vector<4x128xf32>,
    %188 = vector.extract_strided_slice %161 {offsets = [4, 0], sizes = [4, 128], strides = [1, 1]} : vector<8x128xf32> to vector<4x128xf32>
    %189 = vector.extract_strided_slice %188 {offsets = [0, 0], sizes = [1, 128], strides = [1, 1]} : vector<4x128xf32> to vector<1x128xf32>
    %190 = vector.extract_strided_slice %162 {offsets = [0, 0, 0], sizes = [1, 4, 128], strides = [1, 1, 1]} : vector<4x4x128xf32> to vector<1x4x128xf32>
    %191 = vector.shape_cast %190 : vector<1x4x128xf32> to vector<4x128xf32>
    %192 = vector.broadcast %189 : vector<1x128xf32> to vector<4x128xf32>
    %193 = arith.mulf %192, %191 : vector<4x128xf32>
    %194 = vector.extract_strided_slice %188 {offsets = [1, 0], sizes = [1, 128], strides = [1, 1]} : vector<4x128xf32> to vector<1x128xf32>
    %195 = vector.extract_strided_slice %162 {offsets = [1, 0, 0], sizes = [1, 4, 128], strides = [1, 1, 1]} : vector<4x4x128xf32> to vector<1x4x128xf32>
    %196 = vector.shape_cast %195 : vector<1x4x128xf32> to vector<4x128xf32>
    %197 = vector.broadcast %194 : vector<1x128xf32> to vector<4x128xf32>
    %198 = arith.mulf %197, %196 : vector<4x128xf32>
    %199 = arith.addf %193, %198 : vector<4x128xf32>
    %200 = vector.extract_strided_slice %188 {offsets = [2, 0], sizes = [1, 128], strides = [1, 1]} : vector<4x128xf32> to vector<1x128xf32>
    %201 = vector.extract_strided_slice %162 {offsets = [2, 0, 0], sizes = [1, 4, 128], strides = [1, 1, 1]} : vector<4x4x128xf32> to vector<1x4x128xf32>
    %202 = vector.shape_cast %201 : vector<1x4x128xf32> to vector<4x128xf32>
    %203 = vector.broadcast %200 : vector<1x128xf32> to vector<4x128xf32>
    %204 = arith.mulf %203, %202 : vector<4x128xf32>
    %205 = arith.addf %199, %204 : vector<4x128xf32>
    %206 = vector.extract_strided_slice %188 {offsets = [3, 0], sizes = [1, 128], strides = [1, 1]} : vector<4x128xf32> to vector<1x128xf32>
    %207 = vector.extract_strided_slice %162 {offsets = [3, 0, 0], sizes = [1, 4, 128], strides = [1, 1, 1]} : vector<4x4x128xf32> to vector<1x4x128xf32>
    %208 = vector.shape_cast %207 : vector<1x4x128xf32> to vector<4x128xf32>
    %209 = vector.broadcast %206 : vector<1x128xf32> to vector<4x128xf32>
    %210 = arith.mulf %209, %208 : vector<4x128xf32>
    %211 = arith.addf %205, %210 : vector<4x128xf32>
    %c4_36 = arith.constant 4 : index
    %c0_37 = arith.constant 0 : index
    %212 = vector.load %arg10[%c4_36, %c0_37] : memref<8x128xf32, #tpu.memory_space<vmem>>, vector<4x128xf32>
    tpu.vector_store %arg10[%c4_36, %c0_37], %211 {strides = array<i32>} : memref<8x128xf32, #tpu.memory_space<vmem>>, vector<4x128xf32>,
    %c0_38 = arith.constant 0 : index
    %c0_39 = arith.constant 0 : index
    %213 = vector.load %arg10[%c0_38, %c0_39] : memref<8x128xf32, #tpu.memory_space<vmem>>, vector<8x128xf32>
    %c0_40 = arith.constant 0 : index
    %c0_41 = arith.constant 0 : index
    %214 = vector.load %arg7[%c0_40, %c0_41] : memref<128x1024xf32, #tpu.memory_space<vmem>>, vector<128x1024xf32>
    %cst_42 = arith.constant dense<0.000000e+00> : vector<8x1024xf32>
    %215 = tpu.matmul %213, %214, %cst_42 {dimension_numbers = #tpu.dot_dimension_numbers<[1], [0], [0], [1], [0, 0, 1, 1], [], []>} : vector<8x128xf32>, vector<128x1024xf32>, vector<8x1024xf32> -> vector<8x1024xf32>
    %c0_43 = arith.constant 0 : index
    %c0_44 = arith.constant 0 : index
    %216 = vector.load %arg8[%c0_43, %c0_44] : memref<1x1024xf32, #tpu.memory_space<vmem>>, vector<1x1024xf32>
    %217 = vector.broadcast %216 : vector<1x1024xf32> to vector<8x1024xf32>
    %218 = arith.addf %215, %217 : vector<8x1024xf32>
    %c0_45 = arith.constant 0 : index
    %c0_46 = arith.constant 0 : index
    %219 = vector.load %arg9[%c0_45, %c0_46] : memref<8x1024xf32, #tpu.memory_space<vmem>>, vector<8x1024xf32>
    tpu.vector_store %arg9[%c0_45, %c0_46], %218 {strides = array<i32>} : memref<8x1024xf32, #tpu.memory_space<vmem>>, vector<8x1024xf32>,
    return
  }
}

</mosaic_0001>

<llo_original>
// kernel: neural_conv3d_forward.1
$region0: #{neural_conv3d_forward.1}
  #allocation0 [shape = 'u32[]', space=smem, size = 0x4, offset = 0x4, fixed_abs, tag = 'smem constant byte address 0x4 - core index']
  #allocation1 [shape = 'u32[144,128]{1,0:T(1,128)}', space=vmem, size = 0x12000, scoped, tag = 'internal scratch']
  #allocation2 [shape = 'f32[8,128]{1,0:T(8,128)}', space=vmem, size = 0x1000, scoped, tag = 'scratch operand']
  %s0 = inlined_call_operand.vmem [shape: f32[8,1024], index: 0, kind: input, shape index: {}]
  %s1 = inlined_call_operand.vmem [shape: f32[1024,128], index: 1, kind: input, shape index: {}]
  %s2 = inlined_call_operand.vmem [shape: f32[1,128], index: 2, kind: input, shape index: {}]
  %s3 = inlined_call_operand.vmem [shape: f32[4,4,128], index: 3, kind: input, shape index: {}]
  %s4 = inlined_call_operand.vmem [shape: f32[4,4,128], index: 4, kind: input, shape index: {}]
  %s5 = inlined_call_operand.vmem [shape: f32[4,4,128], index: 5, kind: input, shape index: {}]
  %s6 = inlined_call_operand.vmem [shape: f32[4,4,128], index: 6, kind: input, shape index: {}]
  %s7 = inlined_call_operand.vmem [shape: f32[128,1024], index: 7, kind: input, shape index: {}]
  %s8 = inlined_call_operand.vmem [shape: f32[1,1024], index: 8, kind: input, shape index: {}]
  %s9 = inlined_call_operand.vmem [shape: f32[8,1024], index: 9, kind: output, shape index: {}]
  %s10 = sld [smem:[#allocation0]]
  $region46: #{neural_conv3d_forward.1} parent=0
    _
  %s12 = ssub.s32 1, %s10
  %s13 = scalar_select 0, %s12, %s10
  // Predicated region
  $region2: #{neural_conv3d_forward.1} parent=0 // pred_check
    _
  $region3: #{neural_conv3d_forward.1} parent=0 // pred_check_branch
    %15 = sbr.rel (0) target = $region5
  $region4: #{neural_conv3d_forward.1} parent=0 // pred_region
    _
  $region5: #{neural_conv3d_forward.1} parent=0 // pred_fallthru
    _
  // Predicated region
  $region6: #{neural_conv3d_forward.1} parent=0 // pred_check
    _
  $region7: #{neural_conv3d_forward.1} parent=0 // pred_check_branch
    %17 = sbr.rel (0) target = $region9
  $region8: #{neural_conv3d_forward.1} parent=0 // pred_region
    _
  $region9: #{neural_conv3d_forward.1} parent=0 // pred_fallthru
    _
  // Predicated region
  $region10: #{neural_conv3d_forward.1} parent=0 // pred_check
    _
  $region11: #{neural_conv3d_forward.1} parent=0 // pred_check_branch
    %19 = sbr.rel (0) target = $region13
  $region12: #{neural_conv3d_forward.1} parent=0 // pred_region
    _
  $region13: #{neural_conv3d_forward.1} parent=0 // pred_fallthru
    _
  // Predicated region
  $region14: #{neural_conv3d_forward.1} parent=0 // pred_check
    _
  $region15: #{neural_conv3d_forward.1} parent=0 // pred_check_branch
    %21 = sbr.rel (0) target = $region17
  $region16: #{neural_conv3d_forward.1} parent=0 // pred_region
    _
  $region17: #{neural_conv3d_forward.1} parent=0 // pred_fallthru
    _
  // Predicated region
  $region18: #{neural_conv3d_forward.1} parent=0 // pred_check
    _
  $region19: #{neural_conv3d_forward.1} parent=0 // pred_check_branch
    %23 = sbr.rel (0) target = $region21
  $region20: #{neural_conv3d_forward.1} parent=0 // pred_region
    _
  $region21: #{neural_conv3d_forward.1} parent=0 // pred_fallthru
    _
  // Predicated region
  $region22: #{neural_conv3d_forward.1} parent=0 // pred_check
    _
  $region23: #{neural_conv3d_forward.1} parent=0 // pred_check_branch
    %25 = sbr.rel (0) target = $region25
  $region24: #{neural_conv3d_forward.1} parent=0 // pred_region
    _
  $region25: #{neural_conv3d_forward.1} parent=0 // pred_fallthru
    _
  // Predicated region
  $region26: #{neural_conv3d_forward.1} parent=0 // pred_check
    _
  $region27: #{neural_conv3d_forward.1} parent=0 // pred_check_branch
    %27 = sbr.rel (0) target = $region29
  $region28: #{neural_conv3d_forward.1} parent=0 // pred_region
    _
  $region29: #{neural_conv3d_forward.1} parent=0 // pred_fallthru
    _
  // Predicated region
  $region30: #{neural_conv3d_forward.1} parent=0 // pred_check
    _
  $region31: #{neural_conv3d_forward.1} parent=0 // pred_check_branch
    %29 = sbr.rel (0) target = $region33
  $region32: #{neural_conv3d_forward.1} parent=0 // pred_region
    _
  $region33: #{neural_conv3d_forward.1} parent=0 // pred_fallthru
    _
  // Predicated region
  $region34: #{neural_conv3d_forward.1} parent=0 // pred_check
    _
  $region35: #{neural_conv3d_forward.1} parent=0 // pred_check_branch
    %31 = sbr.rel (0) target = $region37
  $region36: #{neural_conv3d_forward.1} parent=0 // pred_region
    _
  $region37: #{neural_conv3d_forward.1} parent=0 // pred_fallthru
    _
  %v32 = vld [vmem:[%s0] sm:$0xff]
  %v33 = vld [vmem:[%s0 + $0x8] sm:$0xff]
  %v34 = vld [vmem:[%s0 + $0x10] sm:$0xff]
  %v35 = vld [vmem:[%s0 + $0x18] sm:$0xff]
  %v36 = vld [vmem:[%s0 + $0x20] sm:$0xff]
  %v37 = vld [vmem:[%s0 + $0x28] sm:$0xff]
  %v38 = vld [vmem:[%s0 + $0x30] sm:$0xff]
  %v39 = vld [vmem:[%s0 + $0x38] sm:$0xff]
  %v40 = vld [vmem:[%s1] sm:$0xff]
  %v41 = vld [vmem:[%s1 + $0x8] sm:$0xff]
  %v42 = vld [vmem:[%s1 + $0x10] sm:$0xff]
  %v43 = vld [vmem:[%s1 + $0x18] sm:$0xff]
  %v44 = vld [vmem:[%s1 + $0x20] sm:$0xff]
  %v45 = vld [vmem:[%s1 + $0x28] sm:$0xff]
  %v46 = vld [vmem:[%s1 + $0x30] sm:$0xff]
  %v47 = vld [vmem:[%s1 + $0x38] sm:$0xff]
  %v48 = vld [vmem:[%s1 + $0x40] sm:$0xff]
  %v49 = vld [vmem:[%s1 + $0x48] sm:$0xff]
  %v50 = vld [vmem:[%s1 + $0x50] sm:$0xff]
  %v51 = vld [vmem:[%s1 + $0x58] sm:$0xff]
  %v52 = vld [vmem:[%s1 + $0x60] sm:$0xff]
  %v53 = vld [vmem:[%s1 + $0x68] sm:$0xff]
  %v54 = vld [vmem:[%s1 + $0x70] sm:$0xff]
  %v55 = vld [vmem:[%s1 + $0x78] sm:$0xff]
  %v56 = vld [vmem:[%s1 + $0x80] sm:$0xff]
  %v57 = vld [vmem:[%s1 + $0x88] sm:$0xff]
  %v58 = vld [vmem:[%s1 + $0x90] sm:$0xff]
  %v59 = vld [vmem:[%s1 + $0x98] sm:$0xff]
  %v60 = vld [vmem:[%s1 + $0xa0] sm:$0xff]
  %v61 = vld [vmem:[%s1 + $0xa8] sm:$0xff]
  %v62 = vld [vmem:[%s1 + $0xb0] sm:$0xff]
  %v63 = vld [vmem:[%s1 + $0xb8] sm:$0xff]
  %v64 = vld [vmem:[%s1 + $0xc0] sm:$0xff]
  %v65 = vld [vmem:[%s1 + $0xc8] sm:$0xff]
  %v66 = vld [vmem:[%s1 + $0xd0] sm:$0xff]
  %v67 = vld [vmem:[%s1 + $0xd8] sm:$0xff]
  %v68 = vld [vmem:[%s1 + $0xe0] sm:$0xff]
  %v69 = vld [vmem:[%s1 + $0xe8] sm:$0xff]
  %v70 = vld [vmem:[%s1 + $0xf0] sm:$0xff]
  %v71 = vld [vmem:[%s1 + $0xf8] sm:$0xff]
  %v72 = vld [vmem:[%s1 + $0x100] sm:$0xff]
  %v73 = vld [vmem:[%s1 + $0x108] sm:$0xff]
  %v74 = vld [vmem:[%s1 + $0x110] sm:$0xff]
  %v75 = vld [vmem:[%s1 + $0x118] sm:$0xff]
  %v76 = vld [vmem:[%s1 + $0x120] sm:$0xff]
  %v77 = vld [vmem:[%s1 + $0x128] sm:$0xff]
  %v78 = vld [vmem:[%s1 + $0x130] sm:$0xff]
  %v79 = vld [vmem:[%s1 + $0x138] sm:$0xff]
  %v80 = vld [vmem:[%s1 + $0x140] sm:$0xff]
  %v81 = vld [vmem:[%s1 + $0x148] sm:$0xff]
  %v82 = vld [vmem:[%s1 + $0x150] sm:$0xff]
  %v83 = vld [vmem:[%s1 + $0x158] sm:$0xff]
  %v84 = vld [vmem:[%s1 + $0x160] sm:$0xff]
  %v85 = vld [vmem:[%s1 + $0x168] sm:$0xff]
  %v86 = vld [vmem:[%s1 + $0x170] sm:$0xff]
  %v87 = vld [vmem:[%s1 + $0x178] sm:$0xff]
  %v88 = vld [vmem:[%s1 + $0x180] sm:$0xff]
  %v89 = vld [vmem:[%s1 + $0x188] sm:$0xff]
  %v90 = vld [vmem:[%s1 + $0x190] sm:$0xff]
  %v91 = vld [vmem:[%s1 + $0x198] sm:$0xff]
  %v92 = vld [vmem:[%s1 + $0x1a0] sm:$0xff]
  %v93 = vld [vmem:[%s1 + $0x1a8] sm:$0xff]
  %v94 = vld [vmem:[%s1 + $0x1b0] sm:$0xff]
  %v95 = vld [vmem:[%s1 + $0x1b8] sm:$0xff]
  %v96 = vld [vmem:[%s1 + $0x1c0] sm:$0xff]
  %v97 = vld [vmem:[%s1 + $0x1c8] sm:$0xff]
  %v98 = vld [vmem:[%s1 + $0x1d0] sm:$0xff]
  %v99 = vld [vmem:[%s1 + $0x1d8] sm:$0xff]
  %v100 = vld [vmem:[%s1 + $0x1e0] sm:$0xff]
  %v101 = vld [vmem:[%s1 + $0x1e8] sm:$0xff]
  %v102 = vld [vmem:[%s1 + $0x1f0] sm:$0xff]
  %v103 = vld [vmem:[%s1 + $0x1f8] sm:$0xff]
  %v104 = vld [vmem:[%s1 + $0x200] sm:$0xff]
  %v105 = vld [vmem:[%s1 + $0x208] sm:$0xff]
  %v106 = vld [vmem:[%s1 + $0x210] sm:$0xff]
  %v107 = vld [vmem:[%s1 + $0x218] sm:$0xff]
  %v108 = vld [vmem:[%s1 + $0x220] sm:$0xff]
  %v109 = vld [vmem:[%s1 + $0x228] sm:$0xff]
  %v110 = vld [vmem:[%s1 + $0x230] sm:$0xff]
  %v111 = vld [vmem:[%s1 + $0x238] sm:$0xff]
  %v112 = vld [vmem:[%s1 + $0x240] sm:$0xff]
  %v113 = vld [vmem:[%s1 + $0x248] sm:$0xff]
  %v114 = vld [vmem:[%s1 + $0x250] sm:$0xff]
  %v115 = vld [vmem:[%s1 + $0x258] sm:$0xff]
  %v116 = vld [vmem:[%s1 + $0x260] sm:$0xff]
  %v117 = vld [vmem:[%s1 + $0x268] sm:$0xff]
  %v118 = vld [vmem:[%s1 + $0x270] sm:$0xff]
  %v119 = vld [vmem:[%s1 + $0x278] sm:$0xff]
  %v120 = vld [vmem:[%s1 + $0x280] sm:$0xff]
  %v121 = vld [vmem:[%s1 + $0x288] sm:$0xff]
  %v122 = vld [vmem:[%s1 + $0x290] sm:$0xff]
  %v123 = vld [vmem:[%s1 + $0x298] sm:$0xff]
  %v124 = vld [vmem:[%s1 + $0x2a0] sm:$0xff]
  %v125 = vld [vmem:[%s1 + $0x2a8] sm:$0xff]
  %v126 = vld [vmem:[%s1 + $0x2b0] sm:$0xff]
  %v127 = vld [vmem:[%s1 + $0x2b8] sm:$0xff]
  %v128 = vld [vmem:[%s1 + $0x2c0] sm:$0xff]
  %v129 = vld [vmem:[%s1 + $0x2c8] sm:$0xff]
  %v130 = vld [vmem:[%s1 + $0x2d0] sm:$0xff]
  %v131 = vld [vmem:[%s1 + $0x2d8] sm:$0xff]
  %v132 = vld [vmem:[%s1 + $0x2e0] sm:$0xff]
  %v133 = vld [vmem:[%s1 + $0x2e8] sm:$0xff]
  %v134 = vld [vmem:[%s1 + $0x2f0] sm:$0xff]
  %v135 = vld [vmem:[%s1 + $0x2f8] sm:$0xff]
  %v136 = vld [vmem:[%s1 + $0x300] sm:$0xff]
  %v137 = vld [vmem:[%s1 + $0x308] sm:$0xff]
  %v138 = vld [vmem:[%s1 + $0x310] sm:$0xff]
  %v139 = vld [vmem:[%s1 + $0x318] sm:$0xff]
  %v140 = vld [vmem:[%s1 + $0x320] sm:$0xff]
  %v141 = vld [vmem:[%s1 + $0x328] sm:$0xff]
  %v142 = vld [vmem:[%s1 + $0x330] sm:$0xff]
  %v143 = vld [vmem:[%s1 + $0x338] sm:$0xff]
  %v144 = vld [vmem:[%s1 + $0x340] sm:$0xff]
  %v145 = vld [vmem:[%s1 + $0x348] sm:$0xff]
  %v146 = vld [vmem:[%s1 + $0x350] sm:$0xff]
  %v147 = vld [vmem:[%s1 + $0x358] sm:$0xff]
  %v148 = vld [vmem:[%s1 + $0x360] sm:$0xff]
  %v149 = vld [vmem:[%s1 + $0x368] sm:$0xff]
  %v150 = vld [vmem:[%s1 + $0x370] sm:$0xff]
  %v151 = vld [vmem:[%s1 + $0x378] sm:$0xff]
  %v152 = vld [vmem:[%s1 + $0x380] sm:$0xff]
  %v153 = vld [vmem:[%s1 + $0x388] sm:$0xff]
  %v154 = vld [vmem:[%s1 + $0x390] sm:$0xff]
  %v155 = vld [vmem:[%s1 + $0x398] sm:$0xff]
  %v156 = vld [vmem:[%s1 + $0x3a0] sm:$0xff]
  %v157 = vld [vmem:[%s1 + $0x3a8] sm:$0xff]
  %v158 = vld [vmem:[%s1 + $0x3b0] sm:$0xff]
  %v159 = vld [vmem:[%s1 + $0x3b8] sm:$0xff]
  %v160 = vld [vmem:[%s1 + $0x3c0] sm:$0xff]
  %v161 = vld [vmem:[%s1 + $0x3c8] sm:$0xff]
  %v162 = vld [vmem:[%s1 + $0x3d0] sm:$0xff]
  %v163 = vld [vmem:[%s1 + $0x3d8] sm:$0xff]
  %v164 = vld [vmem:[%s1 + $0x3e0] sm:$0xff]
  %v165 = vld [vmem:[%s1 + $0x3e8] sm:$0xff]
  %v166 = vld [vmem:[%s1 + $0x3f0] sm:$0xff]
  %v167 = vld [vmem:[%s1 + $0x3f8] sm:$0xff]
  %v168 = vld [vmem:[%s2] sm:$0x1]
  %v170 = vlaneseq
  %v171 = vshrl.u32 %v170, 7
  %v172 = vsub.s32 0, %v171
  %v173 = vrot.slane %v168, %v172
  %175 = vmatprep.subr.mxu0 0.0
  %176 = vmatpush1.msra.mxu0 %v40
  %177 = vmatprep.subr.mxu0 0.0
  %178 = vmatpush1.msra.mxu0 %v41
  %179 = vmatprep.subr.mxu0 0.0
  %180 = vmatpush1.msra.mxu0 %v42
  %181 = vmatprep.subr.mxu0 0.0
  %182 = vmatpush1.msra.mxu0 %v43
  %183 = vmatprep.subr.mxu0 0.0
  %184 = vmatpush1.msra.mxu0 %v44
  %185 = vmatprep.subr.mxu0 0.0
  %186 = vmatpush1.msra.mxu0 %v45
  %187 = vmatprep.subr.mxu0 0.0
  %188 = vmatpush1.msra.mxu0 %v46
  %189 = vmatprep.subr.mxu0 0.0
  %190 = vmatpush1.msra.mxu0 %v47
  %191 = vmatprep.subr.mxu0 0.0
  %192 = vmatpush1.msra.mxu0 %v48
  %193 = vmatprep.subr.mxu0 0.0
  %194 = vmatpush1.msra.mxu0 %v49
  %195 = vmatprep.subr.mxu0 0.0
  %196 = vmatpush1.msra.mxu0 %v50
  %197 = vmatprep.subr.mxu0 0.0
  %198 = vmatpush1.msra.mxu0 %v51
  %199 = vmatprep.subr.mxu0 0.0
  %200 = vmatpush1.msra.mxu0 %v52
  %201 = vmatprep.subr.mxu0 0.0
  %202 = vmatpush1.msra.mxu0 %v53
  %203 = vmatprep.subr.mxu0 0.0
  %204 = vmatpush1.msra.mxu0 %v54
  %205 = vmatprep.subr.mxu0 0.0
  %206 = vmatpush1.msra.mxu0 %v55
  %207 = vmatprep.subr.mxu0 0.0
  %208 = vmatpush1.msra.mxu0 %v56
  %209 = vmatprep.subr.mxu0 0.0
  %210 = vmatpush1.msra.mxu0 %v57
  %211 = vmatprep.subr.mxu0 0.0
  %212 = vmatpush1.msra.mxu0 %v58
  %213 = vmatprep.subr.mxu0 0.0
  %214 = vmatpush1.msra.mxu0 %v59
  %215 = vmatprep.subr.mxu0 0.0
  %216 = vmatpush1.msra.mxu0 %v60
  %217 = vmatprep.subr.mxu0 0.0
  %218 = vmatpush1.msra.mxu0 %v61
  %219 = vmatprep.subr.mxu0 0.0
  %220 = vmatpush1.msra.mxu0 %v62
  %221 = vmatprep.subr.mxu0 0.0
  %222 = vmatpush1.msra.mxu0 %v63
  %223 = vmatprep.subr.mxu0 0.0
  %224 = vmatpush1.msra.mxu0 %v64
  %225 = vmatprep.subr.mxu0 0.0
  %226 = vmatpush1.msra.mxu0 %v65
  %227 = vmatprep.subr.mxu0 0.0
  %228 = vmatpush1.msra.mxu0 %v66
  %229 = vmatprep.subr.mxu0 0.0
  %230 = vmatpush1.msra.mxu0 %v67
  %231 = vmatprep.subr.mxu0 0.0
  %232 = vmatpush1.msra.mxu0 %v68
  %233 = vmatprep.subr.mxu0 0.0
  %234 = vmatpush1.msra.mxu0 %v69
  %235 = vmatprep.subr.mxu0 0.0
  %236 = vmatpush1.msra.mxu0 %v70
  %237 = vmatprep.subr.mxu0 0.0
  %238 = vmatpush1.msra.mxu0 %v71
  %239 = vmatprep.mubr.f32.mxu0 %v33
  %240 = vmatmul.mubr.f32.gmra.mrb[0].mxu0 %v32
  %v241 = vpop.f32.mrb[0].mxu0
  %v242 = vadd.f32 %v173, %v241
  %v243 = vpop.f32.mrb[0].mxu0
  %244 = vdwg.mxu0
  %245 = vmatprep.subr.mxu0 0.0
  %246 = vmatpush1.msra.mxu0 %v72
  %247 = vmatprep.subr.mxu0 0.0
  %248 = vmatpush1.msra.mxu0 %v73
  %249 = vmatprep.subr.mxu0 0.0
  %250 = vmatpush1.msra.mxu0 %v74
  %251 = vmatprep.subr.mxu0 0.0
  %252 = vmatpush1.msra.mxu0 %v75
  %253 = vmatprep.subr.mxu0 0.0
  %254 = vmatpush1.msra.mxu0 %v76
  %255 = vmatprep.subr.mxu0 0.0
  %256 = vmatpush1.msra.mxu0 %v77
  %257 = vmatprep.subr.mxu0 0.0
  %258 = vmatpush1.msra.mxu0 %v78
  %259 = vmatprep.subr.mxu0 0.0
  %260 = vmatpush1.msra.mxu0 %v79
  %261 = vmatprep.subr.mxu0 0.0
  %262 = vmatpush1.msra.mxu0 %v80
  %263 = vmatprep.subr.mxu0 0.0
  %264 = vmatpush1.msra.mxu0 %v81
  %265 = vmatprep.subr.mxu0 0.0
  %266 = vmatpush1.msra.mxu0 %v82
  %267 = vmatprep.subr.mxu0 0.0
  %268 = vmatpush1.msra.mxu0 %v83
  %269 = vmatprep.subr.mxu0 0.0
  %270 = vmatpush1.msra.mxu0 %v84
  %271 = vmatprep.subr.mxu0 0.0
  %272 = vmatpush1.msra.mxu0 %v85
  %273 = vmatprep.subr.mxu0 0.0
  %274 = vmatpush1.msra.mxu0 %v86
  %275 = vmatprep.subr.mxu0 0.0
  %276 = vmatpush1.msra.mxu0 %v87
  %277 = vmatprep.subr.mxu0 0.0
  %278 = vmatpush1.msra.mxu0 %v88
  %279 = vmatprep.subr.mxu0 0.0
  %280 = vmatpush1.msra.mxu0 %v89
  %281 = vmatprep.subr.mxu0 0.0
  %282 = vmatpush1.msra.mxu0 %v90
  %283 = vmatprep.subr.mxu0 0.0
  %284 = vmatpush1.msra.mxu0 %v91
  %285 = vmatprep.subr.mxu0 0.0
  %286 = vmatpush1.msra.mxu0 %v92
  %287 = vmatprep.subr.mxu0 0.0
  %288 = vmatpush1.msra.mxu0 %v93
  %289 = vmatprep.subr.mxu0 0.0
  %290 = vmatpush1.msra.mxu0 %v94
  %291 = vmatprep.subr.mxu0 0.0
  %292 = vmatpush1.msra.mxu0 %v95
  %293 = vmatprep.subr.mxu0 0.0
  %294 = vmatpush1.msra.mxu0 %v96
  %295 = vmatprep.subr.mxu0 0.0
  %296 = vmatpush1.msra.mxu0 %v97
  %297 = vmatprep.subr.mxu0 0.0
  %298 = vmatpush1.msra.mxu0 %v98
  %299 = vmatprep.subr.mxu0 0.0
  %300 = vmatpush1.msra.mxu0 %v99
  %301 = vmatprep.subr.mxu0 0.0
  %302 = vmatpush1.msra.mxu0 %v100
  %303 = vmatprep.subr.mxu0 0.0
  %304 = vmatpush1.msra.mxu0 %v101
  %305 = vmatprep.subr.mxu0 0.0
  %306 = vmatpush1.msra.mxu0 %v102
  %307 = vmatprep.subr.mxu0 0.0
  %308 = vmatpush1.msra.mxu0 %v103
  %309 = vmatprep.mubr.f32.mxu0 %v35
  %310 = vmatmul.mubr.f32.gmra.mrb[0].mxu0 %v34
  %v311 = vpop.f32.mrb[0].mxu0
  %v312 = vadd.f32 %v242, %v311
  %v313 = vpop.f32.mrb[0].mxu0
  %314 = vdwg.mxu0
  %315 = vmatprep.subr.mxu0 0.0
  %316 = vmatpush1.msra.mxu0 %v104
  %317 = vmatprep.subr.mxu0 0.0
  %318 = vmatpush1.msra.mxu0 %v105
  %319 = vmatprep.subr.mxu0 0.0
  %320 = vmatpush1.msra.mxu0 %v106
  %321 = vmatprep.subr.mxu0 0.0
  %322 = vmatpush1.msra.mxu0 %v107
  %323 = vmatprep.subr.mxu0 0.0
  %324 = vmatpush1.msra.mxu0 %v108
  %325 = vmatprep.subr.mxu0 0.0
  %326 = vmatpush1.msra.mxu0 %v109
  %327 = vmatprep.subr.mxu0 0.0
  %328 = vmatpush1.msra.mxu0 %v110
  %329 = vmatprep.subr.mxu0 0.0
  %330 = vmatpush1.msra.mxu0 %v111
  %331 = vmatprep.subr.mxu0 0.0
  %332 = vmatpush1.msra.mxu0 %v112
  %333 = vmatprep.subr.mxu0 0.0
  %334 = vmatpush1.msra.mxu0 %v113
  %335 = vmatprep.subr.mxu0 0.0
  %336 = vmatpush1.msra.mxu0 %v114
  %337 = vmatprep.subr.mxu0 0.0
  %338 = vmatpush1.msra.mxu0 %v115
  %339 = vmatprep.subr.mxu0 0.0
  %340 = vmatpush1.msra.mxu0 %v116
  %341 = vmatprep.subr.mxu0 0.0
  %342 = vmatpush1.msra.mxu0 %v117
  %343 = vmatprep.subr.mxu0 0.0
  %344 = vmatpush1.msra.mxu0 %v118
  %345 = vmatprep.subr.mxu0 0.0
  %346 = vmatpush1.msra.mxu0 %v119
  %347 = vmatprep.subr.mxu0 0.0
  %348 = vmatpush1.msra.mxu0 %v120
  %349 = vmatprep.subr.mxu0 0.0
  %350 = vmatpush1.msra.mxu0 %v121
  %351 = vmatprep.subr.mxu0 0.0
  %352 = vmatpush1.msra.mxu0 %v122
  %353 = vmatprep.subr.mxu0 0.0
  %354 = vmatpush1.msra.mxu0 %v123
  %355 = vmatprep.subr.mxu0 0.0
  %356 = vmatpush1.msra.mxu0 %v124
  %357 = vmatprep.subr.mxu0 0.0
  %358 = vmatpush1.msra.mxu0 %v125
  %359 = vmatprep.subr.mxu0 0.0
  %360 = vmatpush1.msra.mxu0 %v126
  %361 = vmatprep.subr.mxu0 0.0
  %362 = vmatpush1.msra.mxu0 %v127
  %363 = vmatprep.subr.mxu0 0.0
  %364 = vmatpush1.msra.mxu0 %v128
  %365 = vmatprep.subr.mxu0 0.0
  %366 = vmatpush1.msra.mxu0 %v129
  %367 = vmatprep.subr.mxu0 0.0
  %368 = vmatpush1.msra.mxu0 %v130
  %369 = vmatprep.subr.mxu0 0.0
  %370 = vmatpush1.msra.mxu0 %v131
  %371 = vmatprep.subr.mxu0 0.0
  %372 = vmatpush1.msra.mxu0 %v132
  %373 = vmatprep.subr.mxu0 0.0
  %374 = vmatpush1.msra.mxu0 %v133
  %375 = vmatprep.subr.mxu0 0.0
  %376 = vmatpush1.msra.mxu0 %v134
  %377 = vmatprep.subr.mxu0 0.0
  %378 = vmatpush1.msra.mxu0 %v135
  %379 = vmatprep.mubr.f32.mxu0 %v37
  %380 = vmatmul.mubr.f32.gmra.mrb[0].mxu0 %v36
  %v381 = vpop.f32.mrb[0].mxu0
  %v382 = vadd.f32 %v312, %v381
  %v383 = vpop.f32.mrb[0].mxu0
  %384 = vdwg.mxu0
  %385 = vmatprep.subr.mxu0 0.0
  %386 = vmatpush1.msra.mxu0 %v136
  %387 = vmatprep.subr.mxu0 0.0
  %388 = vmatpush1.msra.mxu0 %v137
  %389 = vmatprep.subr.mxu0 0.0
  %390 = vmatpush1.msra.mxu0 %v138
  %391 = vmatprep.subr.mxu0 0.0
  %392 = vmatpush1.msra.mxu0 %v139
  %393 = vmatprep.subr.mxu0 0.0
  %394 = vmatpush1.msra.mxu0 %v140
  %395 = vmatprep.subr.mxu0 0.0
  %396 = vmatpush1.msra.mxu0 %v141
  %397 = vmatprep.subr.mxu0 0.0
  %398 = vmatpush1.msra.mxu0 %v142
  %399 = vmatprep.subr.mxu0 0.0
  %400 = vmatpush1.msra.mxu0 %v143
  %401 = vmatprep.subr.mxu0 0.0
  %402 = vmatpush1.msra.mxu0 %v144
  %403 = vmatprep.subr.mxu0 0.0
  %404 = vmatpush1.msra.mxu0 %v145
  %405 = vmatprep.subr.mxu0 0.0
  %406 = vmatpush1.msra.mxu0 %v146
  %407 = vmatprep.subr.mxu0 0.0
  %408 = vmatpush1.msra.mxu0 %v147
  %409 = vmatprep.subr.mxu0 0.0
  %410 = vmatpush1.msra.mxu0 %v148
  %411 = vmatprep.subr.mxu0 0.0
  %412 = vmatpush1.msra.mxu0 %v149
  %413 = vmatprep.subr.mxu0 0.0
  %414 = vmatpush1.msra.mxu0 %v150
  %415 = vmatprep.subr.mxu0 0.0
  %416 = vmatpush1.msra.mxu0 %v151
  %417 = vmatprep.subr.mxu0 0.0
  %418 = vmatpush1.msra.mxu0 %v152
  %419 = vmatprep.subr.mxu0 0.0
  %420 = vmatpush1.msra.mxu0 %v153
  %421 = vmatprep.subr.mxu0 0.0
  %422 = vmatpush1.msra.mxu0 %v154
  %423 = vmatprep.subr.mxu0 0.0
  %424 = vmatpush1.msra.mxu0 %v155
  %425 = vmatprep.subr.mxu0 0.0
  %426 = vmatpush1.msra.mxu0 %v156
  %427 = vmatprep.subr.mxu0 0.0
  %428 = vmatpush1.msra.mxu0 %v157
  %429 = vmatprep.subr.mxu0 0.0
  %430 = vmatpush1.msra.mxu0 %v158
  %431 = vmatprep.subr.mxu0 0.0
  %432 = vmatpush1.msra.mxu0 %v159
  %433 = vmatprep.subr.mxu0 0.0
  %434 = vmatpush1.msra.mxu0 %v160
  %435 = vmatprep.subr.mxu0 0.0
  %436 = vmatpush1.msra.mxu0 %v161
  %437 = vmatprep.subr.mxu0 0.0
  %438 = vmatpush1.msra.mxu0 %v162
  %439 = vmatprep.subr.mxu0 0.0
  %440 = vmatpush1.msra.mxu0 %v163
  %441 = vmatprep.subr.mxu0 0.0
  %442 = vmatpush1.msra.mxu0 %v164
  %443 = vmatprep.subr.mxu0 0.0
  %444 = vmatpush1.msra.mxu0 %v165
  %445 = vmatprep.subr.mxu0 0.0
  %446 = vmatpush1.msra.mxu0 %v166
  %447 = vmatprep.subr.mxu0 0.0
  %448 = vmatpush1.msra.mxu0 %v167
  %449 = vmatprep.mubr.f32.mxu0 %v39
  %450 = vmatmul.mubr.f32.gmra.mrb[0].mxu0 %v38
  %v451 = vpop.f32.mrb[0].mxu0
  %v452 = vadd.f32 %v382, %v451
  %v453 = vpop.f32.mrb[0].mxu0
  %454 = vdwg.mxu0
  %v455 = vld [vmem:[%s3] sm:$0xf]
  %v456 = vld [vmem:[%s3 + $0x4] sm:$0xf]
  %v457 = vld [vmem:[%s3 + $0x8] sm:$0xf]
  %v458 = vld [vmem:[%s3 + $0xc] sm:$0xf]
  %v459 = vlaneseq
  %v460 = vshrl.u32 %v459, 7
  %v461 = vsub.s32 0, %v460
  %v462 = vrot.slane %v452, %v461
  %v463 = vmul.f32 %v462, %v455
  %v464 = vlaneseq
  %v465 = vshrl.u32 %v464, 7
  %v466 = vsub.s32 1, %v465
  %v467 = vrot.slane %v452, %v466
  %v468 = vmul.f32 %v467, %v456
  %v469 = vadd.f32 %v463, %v468
  %v470 = vlaneseq
  %v471 = vshrl.u32 %v470, 7
  %v472 = vsub.s32 2, %v471
  %v473 = vrot.slane %v452, %v472
  %v474 = vmul.f32 %v473, %v457
  %v475 = vadd.f32 %v469, %v474
  %v476 = vlaneseq
  %v477 = vshrl.u32 %v476, 7
  %v478 = vsub.s32 3, %v477
  %v479 = vrot.slane %v452, %v478
  %v480 = vmul.f32 %v479, %v458
  %v481 = vadd.f32 %v475, %v480
  %482 = vst [vmem:[#allocation2] sm:$0xf] %v481
  %v483 = vlaneseq
  %v484 = vshrl.u32 %v483, 7
  %v485 = vsub.s32 4, %v484
  %v486 = vrot.slane %v452, %v485
  %v487 = vmul.f32 %v486, %v455
  %v488 = vlaneseq
  %v489 = vshrl.u32 %v488, 7
  %v490 = vsub.s32 5, %v489
  %v491 = vrot.slane %v452, %v490
  %v492 = vmul.f32 %v491, %v456
  %v493 = vadd.f32 %v487, %v492
  %v494 = vlaneseq
  %v495 = vshrl.u32 %v494, 7
  %v496 = vsub.s32 6, %v495
  %v497 = vrot.slane %v452, %v496
  %v498 = vmul.f32 %v497, %v457
  %v499 = vadd.f32 %v493, %v498
  %v500 = vlaneseq
  %v501 = vshrl.u32 %v500, 7
  %v502 = vsub.s32 7, %v501
  %v503 = vrot.slane %v452, %v502
  %v504 = vmul.f32 %v503, %v458
  %v505 = vadd.f32 %v499, %v504
  %506 = vst [vmem:[#allocation2 + $0x4] sm:$0xf] %v505
  %v507 = vld [vmem:[#allocation2] sm:$0xff]
  %v508 = vld [vmem:[%s4] sm:$0xf]
  %v509 = vld [vmem:[%s4 + $0x4] sm:$0xf]
  %v510 = vld [vmem:[%s4 + $0x8] sm:$0xf]
  %v511 = vld [vmem:[%s4 + $0xc] sm:$0xf]
  %v512 = vlaneseq
  %v513 = vshrl.u32 %v512, 7
  %v514 = vsub.s32 0, %v513
  %v515 = vrot.slane %v507, %v514
  %v516 = vmul.f32 %v515, %v508
  %v517 = vlaneseq
  %v518 = vshrl.u32 %v517, 7
  %v519 = vsub.s32 1, %v518
  %v520 = vrot.slane %v507, %v519
  %v521 = vmul.f32 %v520, %v509
  %v522 = vadd.f32 %v516, %v521
  %v523 = vlaneseq
  %v524 = vshrl.u32 %v523, 7
  %v525 = vsub.s32 2, %v524
  %v526 = vrot.slane %v507, %v525
  %v527 = vmul.f32 %v526, %v510
  %v528 = vadd.f32 %v522, %v527
  %v529 = vlaneseq
  %v530 = vshrl.u32 %v529, 7
  %v531 = vsub.s32 3, %v530
  %v532 = vrot.slane %v507, %v531
  %v533 = vmul.f32 %v532, %v511
  %v534 = vadd.f32 %v528, %v533
  %535 = vst [vmem:[#allocation2] sm:$0xf] %v534
  %v536 = vlaneseq
  %v537 = vshrl.u32 %v536, 7
  %v538 = vsub.s32 4, %v537
  %v539 = vrot.slane %v507, %v538
  %v540 = vmul.f32 %v539, %v508
  %v541 = vlaneseq
  %v542 = vshrl.u32 %v541, 7
  %v543 = vsub.s32 5, %v542
  %v544 = vrot.slane %v507, %v543
  %v545 = vmul.f32 %v544, %v509
  %v546 = vadd.f32 %v540, %v545
  %v547 = vlaneseq
  %v548 = vshrl.u32 %v547, 7
  %v549 = vsub.s32 6, %v548
  %v550 = vrot.slane %v507, %v549
  %v551 = vmul.f32 %v550, %v510
  %v552 = vadd.f32 %v546, %v551
  %v553 = vlaneseq
  %v554 = vshrl.u32 %v553, 7
  %v555 = vsub.s32 7, %v554
  %v556 = vrot.slane %v507, %v555
  %v557 = vmul.f32 %v556, %v511
  %v558 = vadd.f32 %v552, %v557
  %559 = vst [vmem:[#allocation2 + $0x4] sm:$0xf] %v558
  %v560 = vld [vmem:[#allocation2] sm:$0xff]
  %v561 = vld [vmem:[%s5] sm:$0xf]
  %v562 = vld [vmem:[%s5 + $0x4] sm:$0xf]
  %v563 = vld [vmem:[%s5 + $0x8] sm:$0xf]
  %v564 = vld [vmem:[%s5 + $0xc] sm:$0xf]
  %v565 = vlaneseq
  %v566 = vshrl.u32 %v565, 7
  %v567 = vsub.s32 0, %v566
  %v568 = vrot.slane %v560, %v567
  %v569 = vmul.f32 %v568, %v561
  %v570 = vlaneseq
  %v571 = vshrl.u32 %v570, 7
  %v572 = vsub.s32 1, %v571
  %v573 = vrot.slane %v560, %v572
  %v574 = vmul.f32 %v573, %v562
  %v575 = vadd.f32 %v569, %v574
  %v576 = vlaneseq
  %v577 = vshrl.u32 %v576, 7
  %v578 = vsub.s32 2, %v577
  %v579 = vrot.slane %v560, %v578
  %v580 = vmul.f32 %v579, %v563
  %v581 = vadd.f32 %v575, %v580
  %v582 = vlaneseq
  %v583 = vshrl.u32 %v582, 7
  %v584 = vsub.s32 3, %v583
  %v585 = vrot.slane %v560, %v584
  %v586 = vmul.f32 %v585, %v564
  %v587 = vadd.f32 %v581, %v586
  %588 = vst [vmem:[#allocation2] sm:$0xf] %v587
  %v589 = vlaneseq
  %v590 = vshrl.u32 %v589, 7
  %v591 = vsub.s32 4, %v590
  %v592 = vrot.slane %v560, %v591
  %v593 = vmul.f32 %v592, %v561
  %v594 = vlaneseq
  %v595 = vshrl.u32 %v594, 7
  %v596 = vsub.s32 5, %v595
  %v597 = vrot.slane %v560, %v596
  %v598 = vmul.f32 %v597, %v562
  %v599 = vadd.f32 %v593, %v598
  %v600 = vlaneseq
  %v601 = vshrl.u32 %v600, 7
  %v602 = vsub.s32 6, %v601
  %v603 = vrot.slane %v560, %v602
  %v604 = vmul.f32 %v603, %v563
  %v605 = vadd.f32 %v599, %v604
  %v606 = vlaneseq
  %v607 = vshrl.u32 %v606, 7
  %v608 = vsub.s32 7, %v607
  %v609 = vrot.slane %v560, %v608
  %v610 = vmul.f32 %v609, %v564
  %v611 = vadd.f32 %v605, %v610
  %612 = vst [vmem:[#allocation2 + $0x4] sm:$0xf] %v611
  %v613 = vld [vmem:[#allocation2] sm:$0xff]
  %v614 = vld [vmem:[%s6] sm:$0xf]
  %v615 = vld [vmem:[%s6 + $0x4] sm:$0xf]
  %v616 = vld [vmem:[%s6 + $0x8] sm:$0xf]
  %v617 = vld [vmem:[%s6 + $0xc] sm:$0xf]
  %v618 = vlaneseq
  %v619 = vshrl.u32 %v618, 7
  %v620 = vsub.s32 0, %v619
  %v621 = vrot.slane %v613, %v620
  %v622 = vmul.f32 %v621, %v614
  %v623 = vlaneseq
  %v624 = vshrl.u32 %v623, 7
  %v625 = vsub.s32 1, %v624
  %v626 = vrot.slane %v613, %v625
  %v627 = vmul.f32 %v626, %v615
  %v628 = vadd.f32 %v622, %v627
  %v629 = vlaneseq
  %v630 = vshrl.u32 %v629, 7
  %v631 = vsub.s32 2, %v630
  %v632 = vrot.slane %v613, %v631
  %v633 = vmul.f32 %v632, %v616
  %v634 = vadd.f32 %v628, %v633
  %v635 = vlaneseq
  %v636 = vshrl.u32 %v635, 7
  %v637 = vsub.s32 3, %v636
  %v638 = vrot.slane %v613, %v637
  %v639 = vmul.f32 %v638, %v617
  %v640 = vadd.f32 %v634, %v639
  %641 = vst [vmem:[#allocation2] sm:$0xf] %v640
  %v642 = vlaneseq
  %v643 = vshrl.u32 %v642, 7
  %v644 = vsub.s32 4, %v643
  %v645 = vrot.slane %v613, %v644
  %v646 = vmul.f32 %v645, %v614
  %v647 = vlaneseq
  %v648 = vshrl.u32 %v647, 7
  %v649 = vsub.s32 5, %v648
  %v650 = vrot.slane %v613, %v649
  %v651 = vmul.f32 %v650, %v615
  %v652 = vadd.f32 %v646, %v651
  %v653 = vlaneseq
  %v654 = vshrl.u32 %v653, 7
  %v655 = vsub.s32 6, %v654
  %v656 = vrot.slane %v613, %v655
  %v657 = vmul.f32 %v656, %v616
  %v658 = vadd.f32 %v652, %v657
  %v659 = vlaneseq
  %v660 = vshrl.u32 %v659, 7
  %v661 = vsub.s32 7, %v660
  %v662 = vrot.slane %v613, %v661
  %v663 = vmul.f32 %v662, %v617
  %v664 = vadd.f32 %v658, %v663
  %665 = vst [vmem:[#allocation2 + $0x4] sm:$0xf] %v664
  %v666 = vld [vmem:[#allocation2] sm:$0xff]
  %v667 = vld [vmem:[%s7] sm:$0xff]
  %v668 = vld [vmem:[%s7 + $0x8] sm:$0xff]
  %v669 = vld [vmem:[%s7 + $0x10] sm:$0xff]
  %v670 = vld [vmem:[%s7 + $0x18] sm:$0xff]
  %v671 = vld [vmem:[%s7 + $0x20] sm:$0xff]
  %v672 = vld [vmem:[%s7 + $0x28] sm:$0xff]
  %v673 = vld [vmem:[%s7 + $0x30] sm:$0xff]
  %v674 = vld [vmem:[%s7 + $0x38] sm:$0xff]
  %v675 = vld [vmem:[%s7 + $0x40] sm:$0xff]
  %v676 = vld [vmem:[%s7 + $0x48] sm:$0xff]
  %v677 = vld [vmem:[%s7 + $0x50] sm:$0xff]
  %v678 = vld [vmem:[%s7 + $0x58] sm:$0xff]
  %v679 = vld [vmem:[%s7 + $0x60] sm:$0xff]
  %v680 = vld [vmem:[%s7 + $0x68] sm:$0xff]
  %v681 = vld [vmem:[%s7 + $0x70] sm:$0xff]
  %v682 = vld [vmem:[%s7 + $0x78] sm:$0xff]
  %v683 = vld [vmem:[%s7 + $0x80] sm:$0xff]
  %v684 = vld [vmem:[%s7 + $0x88] sm:$0xff]
  %v685 = vld [vmem:[%s7 + $0x90] sm:$0xff]
  %v686 = vld [vmem:[%s7 + $0x98] sm:$0xff]
  %v687 = vld [vmem:[%s7 + $0xa0] sm:$0xff]
  %v688 = vld [vmem:[%s7 + $0xa8] sm:$0xff]
  %v689 = vld [vmem:[%s7 + $0xb0] sm:$0xff]
  %v690 = vld [vmem:[%s7 + $0xb8] sm:$0xff]
  %v691 = vld [vmem:[%s7 + $0xc0] sm:$0xff]
  %v692 = vld [vmem:[%s7 + $0xc8] sm:$0xff]
  %v693 = vld [vmem:[%s7 + $0xd0] sm:$0xff]
  %v694 = vld [vmem:[%s7 + $0xd8] sm:$0xff]
  %v695 = vld [vmem:[%s7 + $0xe0] sm:$0xff]
  %v696 = vld [vmem:[%s7 + $0xe8] sm:$0xff]
  %v697 = vld [vmem:[%s7 + $0xf0] sm:$0xff]
  %v698 = vld [vmem:[%s7 + $0xf8] sm:$0xff]
  %v699 = vld [vmem:[%s7 + $0x100] sm:$0xff]
  %v700 = vld [vmem:[%s7 + $0x108] sm:$0xff]
  %v701 = vld [vmem:[%s7 + $0x110] sm:$0xff]
  %v702 = vld [vmem:[%s7 + $0x118] sm:$0xff]
  %v703 = vld [vmem:[%s7 + $0x120] sm:$0xff]
  %v704 = vld [vmem:[%s7 + $0x128] sm:$0xff]
  %v705 = vld [vmem:[%s7 + $0x130] sm:$0xff]
  %v706 = vld [vmem:[%s7 + $0x138] sm:$0xff]
  %v707 = vld [vmem:[%s7 + $0x140] sm:$0xff]
  %v708 = vld [vmem:[%s7 + $0x148] sm:$0xff]
  %v709 = vld [vmem:[%s7 + $0x150] sm:$0xff]
  %v710 = vld [vmem:[%s7 + $0x158] sm:$0xff]
  %v711 = vld [vmem:[%s7 + $0x160] sm:$0xff]
  %v712 = vld [vmem:[%s7 + $0x168] sm:$0xff]
  %v713 = vld [vmem:[%s7 + $0x170] sm:$0xff]
  %v714 = vld [vmem:[%s7 + $0x178] sm:$0xff]
  %v715 = vld [vmem:[%s7 + $0x180] sm:$0xff]
  %v716 = vld [vmem:[%s7 + $0x188] sm:$0xff]
  %v717 = vld [vmem:[%s7 + $0x190] sm:$0xff]
  %v718 = vld [vmem:[%s7 + $0x198] sm:$0xff]
  %v719 = vld [vmem:[%s7 + $0x1a0] sm:$0xff]
  %v720 = vld [vmem:[%s7 + $0x1a8] sm:$0xff]
  %v721 = vld [vmem:[%s7 + $0x1b0] sm:$0xff]
  %v722 = vld [vmem:[%s7 + $0x1b8] sm:$0xff]
  %v723 = vld [vmem:[%s7 + $0x1c0] sm:$0xff]
  %v724 = vld [vmem:[%s7 + $0x1c8] sm:$0xff]
  %v725 = vld [vmem:[%s7 + $0x1d0] sm:$0xff]
  %v726 = vld [vmem:[%s7 + $0x1d8] sm:$0xff]
  %v727 = vld [vmem:[%s7 + $0x1e0] sm:$0xff]
  %v728 = vld [vmem:[%s7 + $0x1e8] sm:$0xff]
  %v729 = vld [vmem:[%s7 + $0x1f0] sm:$0xff]
  %v730 = vld [vmem:[%s7 + $0x1f8] sm:$0xff]
  %v731 = vld [vmem:[%s7 + $0x200] sm:$0xff]
  %v732 = vld [vmem:[%s7 + $0x208] sm:$0xff]
  %v733 = vld [vmem:[%s7 + $0x210] sm:$0xff]
  %v734 = vld [vmem:[%s7 + $0x218] sm:$0xff]
  %v735 = vld [vmem:[%s7 + $0x220] sm:$0xff]
  %v736 = vld [vmem:[%s7 + $0x228] sm:$0xff]
  %v737 = vld [vmem:[%s7 + $0x230] sm:$0xff]
  %v738 = vld [vmem:[%s7 + $0x238] sm:$0xff]
  %v739 = vld [vmem:[%s7 + $0x240] sm:$0xff]
  %v740 = vld [vmem:[%s7 + $0x248] sm:$0xff]
  %v741 = vld [vmem:[%s7 + $0x250] sm:$0xff]
  %v742 = vld [vmem:[%s7 + $0x258] sm:$0xff]
  %v743 = vld [vmem:[%s7 + $0x260] sm:$0xff]
  %v744 = vld [vmem:[%s7 + $0x268] sm:$0xff]
  %v745 = vld [vmem:[%s7 + $0x270] sm:$0xff]
  %v746 = vld [vmem:[%s7 + $0x278] sm:$0xff]
  %v747 = vld [vmem:[%s7 + $0x280] sm:$0xff]
  %v748 = vld [vmem:[%s7 + $0x288] sm:$0xff]
  %v749 = vld [vmem:[%s7 + $0x290] sm:$0xff]
  %v750 = vld [vmem:[%s7 + $0x298] sm:$0xff]
  %v751 = vld [vmem:[%s7 + $0x2a0] sm:$0xff]
  %v752 = vld [vmem:[%s7 + $0x2a8] sm:$0xff]
  %v753 = vld [vmem:[%s7 + $0x2b0] sm:$0xff]
  %v754 = vld [vmem:[%s7 + $0x2b8] sm:$0xff]
  %v755 = vld [vmem:[%s7 + $0x2c0] sm:$0xff]
  %v756 = vld [vmem:[%s7 + $0x2c8] sm:$0xff]
  %v757 = vld [vmem:[%s7 + $0x2d0] sm:$0xff]
  %v758 = vld [vmem:[%s7 + $0x2d8] sm:$0xff]
  %v759 = vld [vmem:[%s7 + $0x2e0] sm:$0xff]
  %v760 = vld [vmem:[%s7 + $0x2e8] sm:$0xff]
  %v761 = vld [vmem:[%s7 + $0x2f0] sm:$0xff]
  %v762 = vld [vmem:[%s7 + $0x2f8] sm:$0xff]
  %v763 = vld [vmem:[%s7 + $0x300] sm:$0xff]
  %v764 = vld [vmem:[%s7 + $0x308] sm:$0xff]
  %v765 = vld [vmem:[%s7 + $0x310] sm:$0xff]
  %v766 = vld [vmem:[%s7 + $0x318] sm:$0xff]
  %v767 = vld [vmem:[%s7 + $0x320] sm:$0xff]
  %v768 = vld [vmem:[%s7 + $0x328] sm:$0xff]
  %v769 = vld [vmem:[%s7 + $0x330] sm:$0xff]
  %v770 = vld [vmem:[%s7 + $0x338] sm:$0xff]
  %v771 = vld [vmem:[%s7 + $0x340] sm:$0xff]
  %v772 = vld [vmem:[%s7 + $0x348] sm:$0xff]
  %v773 = vld [vmem:[%s7 + $0x350] sm:$0xff]
  %v774 = vld [vmem:[%s7 + $0x358] sm:$0xff]
  %v775 = vld [vmem:[%s7 + $0x360] sm:$0xff]
  %v776 = vld [vmem:[%s7 + $0x368] sm:$0xff]
  %v777 = vld [vmem:[%s7 + $0x370] sm:$0xff]
  %v778 = vld [vmem:[%s7 + $0x378] sm:$0xff]
  %v779 = vld [vmem:[%s7 + $0x380] sm:$0xff]
  %v780 = vld [vmem:[%s7 + $0x388] sm:$0xff]
  %v781 = vld [vmem:[%s7 + $0x390] sm:$0xff]
  %v782 = vld [vmem:[%s7 + $0x398] sm:$0xff]
  %v783 = vld [vmem:[%s7 + $0x3a0] sm:$0xff]
  %v784 = vld [vmem:[%s7 + $0x3a8] sm:$0xff]
  %v785 = vld [vmem:[%s7 + $0x3b0] sm:$0xff]
  %v786 = vld [vmem:[%s7 + $0x3b8] sm:$0xff]
  %v787 = vld [vmem:[%s7 + $0x3c0] sm:$0xff]
  %v788 = vld [vmem:[%s7 + $0x3c8] sm:$0xff]
  %v789 = vld [vmem:[%s7 + $0x3d0] sm:$0xff]
  %v790 = vld [vmem:[%s7 + $0x3d8] sm:$0xff]
  %v791 = vld [vmem:[%s7 + $0x3e0] sm:$0xff]
  %v792 = vld [vmem:[%s7 + $0x3e8] sm:$0xff]
  %v793 = vld [vmem:[%s7 + $0x3f0] sm:$0xff]
  %v794 = vld [vmem:[%s7 + $0x3f8] sm:$0xff]
  %v795 = vld [vmem:[%s8] sm:$0xff]
  %v797 = vlaneseq
  %v798 = vshrl.u32 %v797, 7
  %v799 = vsub.s32 0, %v798
  %v800 = vrot.slane %v795, %v799
  %v801 = vlaneseq
  %v802 = vshrl.u32 %v801, 7
  %v803 = vsub.s32 1, %v802
  %v804 = vrot.slane %v795, %v803
  %v805 = vlaneseq
  %v806 = vshrl.u32 %v805, 7
  %v807 = vsub.s32 2, %v806
  %v808 = vrot.slane %v795, %v807
  %v809 = vlaneseq
  %v810 = vshrl.u32 %v809, 7
  %v811 = vsub.s32 3, %v810
  %v812 = vrot.slane %v795, %v811
  %v813 = vlaneseq
  %v814 = vshrl.u32 %v813, 7
  %v815 = vsub.s32 4, %v814
  %v816 = vrot.slane %v795, %v815
  %v817 = vlaneseq
  %v818 = vshrl.u32 %v817, 7
  %v819 = vsub.s32 5, %v818
  %v820 = vrot.slane %v795, %v819
  %v821 = vlaneseq
  %v822 = vshrl.u32 %v821, 7
  %v823 = vsub.s32 6, %v822
  %v824 = vrot.slane %v795, %v823
  %v825 = vlaneseq
  %v826 = vshrl.u32 %v825, 7
  %v827 = vsub.s32 7, %v826
  %v828 = vrot.slane %v795, %v827
  %837 = vmatprep.subr.mxu0 %v668
  %838 = vmatpush1.msra.mxu0 %v667
  %839 = vmatprep.subr.mxu0 %v676
  %840 = vmatpush1.msra.mxu0 %v675
  %841 = vmatprep.subr.mxu0 %v684
  %842 = vmatpush1.msra.mxu0 %v683
  %843 = vmatprep.subr.mxu0 %v692
  %844 = vmatpush1.msra.mxu0 %v691
  %845 = vmatprep.subr.mxu0 %v700
  %846 = vmatpush1.msra.mxu0 %v699
  %847 = vmatprep.subr.mxu0 %v708
  %848 = vmatpush1.msra.mxu0 %v707
  %849 = vmatprep.subr.mxu0 %v716
  %850 = vmatpush1.msra.mxu0 %v715
  %851 = vmatprep.subr.mxu0 %v724
  %852 = vmatpush1.msra.mxu0 %v723
  %853 = vmatprep.subr.mxu0 %v732
  %854 = vmatpush1.msra.mxu0 %v731
  %855 = vmatprep.subr.mxu0 %v740
  %856 = vmatpush1.msra.mxu0 %v739
  %857 = vmatprep.subr.mxu0 %v748
  %858 = vmatpush1.msra.mxu0 %v747
  %859 = vmatprep.subr.mxu0 %v756
  %860 = vmatpush1.msra.mxu0 %v755
  %861 = vmatprep.subr.mxu0 %v764
  %862 = vmatpush1.msra.mxu0 %v763
  %863 = vmatprep.subr.mxu0 %v772
  %864 = vmatpush1.msra.mxu0 %v771
  %865 = vmatprep.subr.mxu0 %v780
  %866 = vmatpush1.msra.mxu0 %v779
  %867 = vmatprep.subr.mxu0 %v788
  %868 = vmatpush1.msra.mxu0 %v787
  %869 = vmatprep.subr.mxu0 0.0
  %870 = vmatpush1.msra.mxu0 0.0
  %871 = vmatprep.subr.mxu0 0.0
  %872 = vmatpush1.msra.mxu0 0.0
  %873 = vmatprep.subr.mxu0 0.0
  %874 = vmatpush1.msra.mxu0 0.0
  %875 = vmatprep.subr.mxu0 0.0
  %876 = vmatpush1.msra.mxu0 0.0
  %877 = vmatprep.subr.mxu0 0.0
  %878 = vmatpush1.msra.mxu0 0.0
  %879 = vmatprep.subr.mxu0 0.0
  %880 = vmatpush1.msra.mxu0 0.0
  %881 = vmatprep.subr.mxu0 0.0
  %882 = vmatpush1.msra.mxu0 0.0
  %883 = vmatprep.subr.mxu0 0.0
  %884 = vmatpush1.msra.mxu0 0.0
  %885 = vmatprep.subr.mxu0 0.0
  %886 = vmatpush1.msra.mxu0 0.0
  %887 = vmatprep.subr.mxu0 0.0
  %888 = vmatpush1.msra.mxu0 0.0
  %889 = vmatprep.subr.mxu0 0.0
  %890 = vmatpush1.msra.mxu0 0.0
  %891 = vmatprep.subr.mxu0 0.0
  %892 = vmatpush1.msra.mxu0 0.0
  %893 = vmatprep.subr.mxu0 0.0
  %894 = vmatpush1.msra.mxu0 0.0
  %895 = vmatprep.subr.mxu0 0.0
  %896 = vmatpush1.msra.mxu0 0.0
  %897 = vmatprep.subr.mxu0 0.0
  %898 = vmatpush1.msra.mxu0 0.0
  %899 = vmatprep.subr.mxu0 0.0
  %900 = vmatpush1.msra.mxu0 0.0
  %901 = vmatprep.mubr.f32.mxu0 0.0
  %902 = vmatmul.mubr.f32.gmra.mrb[0].mxu0 %v666
  %v903 = vpop.f32.mrb[0].mxu0
  %v904 = vadd.f32 %v800, %v903
  %v905 = vpop.f32.mrb[0].mxu0
  %v906 = vadd.f32 %v804, %v905
  %907 = vdwg.mxu0
  %908 = vmatprep.subr.mxu0 %v670
  %909 = vmatpush1.msra.mxu0 %v669
  %910 = vmatprep.subr.mxu0 %v678
  %911 = vmatpush1.msra.mxu0 %v677
  %912 = vmatprep.subr.mxu0 %v686
  %913 = vmatpush1.msra.mxu0 %v685
  %914 = vmatprep.subr.mxu0 %v694
  %915 = vmatpush1.msra.mxu0 %v693
  %916 = vmatprep.subr.mxu0 %v702
  %917 = vmatpush1.msra.mxu0 %v701
  %918 = vmatprep.subr.mxu0 %v710
  %919 = vmatpush1.msra.mxu0 %v709
  %920 = vmatprep.subr.mxu0 %v718
  %921 = vmatpush1.msra.mxu0 %v717
  %922 = vmatprep.subr.mxu0 %v726
  %923 = vmatpush1.msra.mxu0 %v725
  %924 = vmatprep.subr.mxu0 %v734
  %925 = vmatpush1.msra.mxu0 %v733
  %926 = vmatprep.subr.mxu0 %v742
  %927 = vmatpush1.msra.mxu0 %v741
  %928 = vmatprep.subr.mxu0 %v750
  %929 = vmatpush1.msra.mxu0 %v749
  %930 = vmatprep.subr.mxu0 %v758
  %931 = vmatpush1.msra.mxu0 %v757
  %932 = vmatprep.subr.mxu0 %v766
  %933 = vmatpush1.msra.mxu0 %v765
  %934 = vmatprep.subr.mxu0 %v774
  %935 = vmatpush1.msra.mxu0 %v773
  %936 = vmatprep.subr.mxu0 %v782
  %937 = vmatpush1.msra.mxu0 %v781
  %938 = vmatprep.subr.mxu0 %v790
  %939 = vmatpush1.msra.mxu0 %v789
  %940 = vmatprep.subr.mxu0 0.0
  %941 = vmatpush1.msra.mxu0 0.0
  %942 = vmatprep.subr.mxu0 0.0
  %943 = vmatpush1.msra.mxu0 0.0
  %944 = vmatprep.subr.mxu0 0.0
  %945 = vmatpush1.msra.mxu0 0.0
  %946 = vmatprep.subr.mxu0 0.0
  %947 = vmatpush1.msra.mxu0 0.0
  %948 = vmatprep.subr.mxu0 0.0
  %949 = vmatpush1.msra.mxu0 0.0
  %950 = vmatprep.subr.mxu0 0.0
  %951 = vmatpush1.msra.mxu0 0.0
  %952 = vmatprep.subr.mxu0 0.0
  %953 = vmatpush1.msra.mxu0 0.0
  %954 = vmatprep.subr.mxu0 0.0
  %955 = vmatpush1.msra.mxu0 0.0
  %956 = vmatprep.subr.mxu0 0.0
  %957 = vmatpush1.msra.mxu0 0.0
  %958 = vmatprep.subr.mxu0 0.0
  %959 = vmatpush1.msra.mxu0 0.0
  %960 = vmatprep.subr.mxu0 0.0
  %961 = vmatpush1.msra.mxu0 0.0
  %962 = vmatprep.subr.mxu0 0.0
  %963 = vmatpush1.msra.mxu0 0.0
  %964 = vmatprep.subr.mxu0 0.0
  %965 = vmatpush1.msra.mxu0 0.0
  %966 = vmatprep.subr.mxu0 0.0
  %967 = vmatpush1.msra.mxu0 0.0
  %968 = vmatprep.subr.mxu0 0.0
  %969 = vmatpush1.msra.mxu0 0.0
  %970 = vmatprep.subr.mxu0 0.0
  %971 = vmatpush1.msra.mxu0 0.0
  %972 = vmatprep.mubr.f32.mxu0 0.0
  %973 = vmatmul.mubr.f32.gmra.mrb[0].mxu0 %v666
  %v974 = vpop.f32.mrb[0].mxu0
  %v975 = vadd.f32 %v808, %v974
  %v976 = vpop.f32.mrb[0].mxu0
  %v977 = vadd.f32 %v812, %v976
  %978 = vdwg.mxu0
  %979 = vmatprep.subr.mxu0 %v672
  %980 = vmatpush1.msra.mxu0 %v671
  %981 = vmatprep.subr.mxu0 %v680
  %982 = vmatpush1.msra.mxu0 %v679
  %983 = vmatprep.subr.mxu0 %v688
  %984 = vmatpush1.msra.mxu0 %v687
  %985 = vmatprep.subr.mxu0 %v696
  %986 = vmatpush1.msra.mxu0 %v695
  %987 = vmatprep.subr.mxu0 %v704
  %988 = vmatpush1.msra.mxu0 %v703
  %989 = vmatprep.subr.mxu0 %v712
  %990 = vmatpush1.msra.mxu0 %v711
  %991 = vmatprep.subr.mxu0 %v720
  %992 = vmatpush1.msra.mxu0 %v719
  %993 = vmatprep.subr.mxu0 %v728
  %994 = vmatpush1.msra.mxu0 %v727
  %995 = vmatprep.subr.mxu0 %v736
  %996 = vmatpush1.msra.mxu0 %v735
  %997 = vmatprep.subr.mxu0 %v744
  %998 = vmatpush1.msra.mxu0 %v743
  %999 = vmatprep.subr.mxu0 %v752
  %1000 = vmatpush1.msra.mxu0 %v751
  %1001 = vmatprep.subr.mxu0 %v760
  %1002 = vmatpush1.msra.mxu0 %v759
  %1003 = vmatprep.subr.mxu0 %v768
  %1004 = vmatpush1.msra.mxu0 %v767
  %1005 = vmatprep.subr.mxu0 %v776
  %1006 = vmatpush1.msra.mxu0 %v775
  %1007 = vmatprep.subr.mxu0 %v784
  %1008 = vmatpush1.msra.mxu0 %v783
  %1009 = vmatprep.subr.mxu0 %v792
  %1010 = vmatpush1.msra.mxu0 %v791
  %1011 = vmatprep.subr.mxu0 0.0
  %1012 = vmatpush1.msra.mxu0 0.0
  %1013 = vmatprep.subr.mxu0 0.0
  %1014 = vmatpush1.msra.mxu0 0.0
  %1015 = vmatprep.subr.mxu0 0.0
  %1016 = vmatpush1.msra.mxu0 0.0
  %1017 = vmatprep.subr.mxu0 0.0
  %1018 = vmatpush1.msra.mxu0 0.0
  %1019 = vmatprep.subr.mxu0 0.0
  %1020 = vmatpush1.msra.mxu0 0.0
  %1021 = vmatprep.subr.mxu0 0.0
  %1022 = vmatpush1.msra.mxu0 0.0
  %1023 = vmatprep.subr.mxu0 0.0
  %1024 = vmatpush1.msra.mxu0 0.0
  %1025 = vmatprep.subr.mxu0 0.0
  %1026 = vmatpush1.msra.mxu0 0.0
  %1027 = vmatprep.subr.mxu0 0.0
  %1028 = vmatpush1.msra.mxu0 0.0
  %1029 = vmatprep.subr.mxu0 0.0
  %1030 = vmatpush1.msra.mxu0 0.0
  %1031 = vmatprep.subr.mxu0 0.0
  %1032 = vmatpush1.msra.mxu0 0.0
  %1033 = vmatprep.subr.mxu0 0.0
  %1034 = vmatpush1.msra.mxu0 0.0
  %1035 = vmatprep.subr.mxu0 0.0
  %1036 = vmatpush1.msra.mxu0 0.0
  %1037 = vmatprep.subr.mxu0 0.0
  %1038 = vmatpush1.msra.mxu0 0.0
  %1039 = vmatprep.subr.mxu0 0.0
  %1040 = vmatpush1.msra.mxu0 0.0
  %1041 = vmatprep.subr.mxu0 0.0
  %1042 = vmatpush1.msra.mxu0 0.0
  %1043 = vmatprep.mubr.f32.mxu0 0.0
  %1044 = vmatmul.mubr.f32.gmra.mrb[0].mxu0 %v666
  %v1045 = vpop.f32.mrb[0].mxu0
  %v1046 = vadd.f32 %v816, %v1045
  %v1047 = vpop.f32.mrb[0].mxu0
  %v1048 = vadd.f32 %v820, %v1047
  %1049 = vdwg.mxu0
  %1050 = vmatprep.subr.mxu0 %v674
  %1051 = vmatpush1.msra.mxu0 %v673
  %1052 = vmatprep.subr.mxu0 %v682
  %1053 = vmatpush1.msra.mxu0 %v681
  %1054 = vmatprep.subr.mxu0 %v690
  %1055 = vmatpush1.msra.mxu0 %v689
  %1056 = vmatprep.subr.mxu0 %v698
  %1057 = vmatpush1.msra.mxu0 %v697
  %1058 = vmatprep.subr.mxu0 %v706
  %1059 = vmatpush1.msra.mxu0 %v705
  %1060 = vmatprep.subr.mxu0 %v714
  %1061 = vmatpush1.msra.mxu0 %v713
  %1062 = vmatprep.subr.mxu0 %v722
  %1063 = vmatpush1.msra.mxu0 %v721
  %1064 = vmatprep.subr.mxu0 %v730
  %1065 = vmatpush1.msra.mxu0 %v729
  %1066 = vmatprep.subr.mxu0 %v738
  %1067 = vmatpush1.msra.mxu0 %v737
  %1068 = vmatprep.subr.mxu0 %v746
  %1069 = vmatpush1.msra.mxu0 %v745
  %1070 = vmatprep.subr.mxu0 %v754
  %1071 = vmatpush1.msra.mxu0 %v753
  %1072 = vmatprep.subr.mxu0 %v762
  %1073 = vmatpush1.msra.mxu0 %v761
  %1074 = vmatprep.subr.mxu0 %v770
  %1075 = vmatpush1.msra.mxu0 %v769
  %1076 = vmatprep.subr.mxu0 %v778
  %1077 = vmatpush1.msra.mxu0 %v777
  %1078 = vmatprep.subr.mxu0 %v786
  %1079 = vmatpush1.msra.mxu0 %v785
  %1080 = vmatprep.subr.mxu0 %v794
  %1081 = vmatpush1.msra.mxu0 %v793
  %1082 = vmatprep.subr.mxu0 0.0
  %1083 = vmatpush1.msra.mxu0 0.0
  %1084 = vmatprep.subr.mxu0 0.0
  %1085 = vmatpush1.msra.mxu0 0.0
  %1086 = vmatprep.subr.mxu0 0.0
  %1087 = vmatpush1.msra.mxu0 0.0
  %1088 = vmatprep.subr.mxu0 0.0
  %1089 = vmatpush1.msra.mxu0 0.0
  %1090 = vmatprep.subr.mxu0 0.0
  %1091 = vmatpush1.msra.mxu0 0.0
  %1092 = vmatprep.subr.mxu0 0.0
  %1093 = vmatpush1.msra.mxu0 0.0
  %1094 = vmatprep.subr.mxu0 0.0
  %1095 = vmatpush1.msra.mxu0 0.0
  %1096 = vmatprep.subr.mxu0 0.0
  %1097 = vmatpush1.msra.mxu0 0.0
  %1098 = vmatprep.subr.mxu0 0.0
  %1099 = vmatpush1.msra.mxu0 0.0
  %1100 = vmatprep.subr.mxu0 0.0
  %1101 = vmatpush1.msra.mxu0 0.0
  %1102 = vmatprep.subr.mxu0 0.0
  %1103 = vmatpush1.msra.mxu0 0.0
  %1104 = vmatprep.subr.mxu0 0.0
  %1105 = vmatpush1.msra.mxu0 0.0
  %1106 = vmatprep.subr.mxu0 0.0
  %1107 = vmatpush1.msra.mxu0 0.0
  %1108 = vmatprep.subr.mxu0 0.0
  %1109 = vmatpush1.msra.mxu0 0.0
  %1110 = vmatprep.subr.mxu0 0.0
  %1111 = vmatpush1.msra.mxu0 0.0
  %1112 = vmatprep.subr.mxu0 0.0
  %1113 = vmatpush1.msra.mxu0 0.0
  %1114 = vmatprep.mubr.f32.mxu0 0.0
  %1115 = vmatmul.mubr.f32.gmra.mrb[0].mxu0 %v666
  %v1116 = vpop.f32.mrb[0].mxu0
  %v1117 = vadd.f32 %v824, %v1116
  %v1118 = vpop.f32.mrb[0].mxu0
  %v1119 = vadd.f32 %v828, %v1118
  %1120 = vdwg.mxu0
  %1121 = vst [vmem:[%s9] sm:$0xff] %v904
  %1122 = vst [vmem:[%s9 + $0x8] sm:$0xff] %v906
  %1123 = vst [vmem:[%s9 + $0x10] sm:$0xff] %v975
  %1124 = vst [vmem:[%s9 + $0x18] sm:$0xff] %v977
  %1125 = vst [vmem:[%s9 + $0x20] sm:$0xff] %v1046
  %1126 = vst [vmem:[%s9 + $0x28] sm:$0xff] %v1048
  %1127 = vst [vmem:[%s9 + $0x30] sm:$0xff] %v1117
  %1128 = vst [vmem:[%s9 + $0x38] sm:$0xff] %v1119
  // Predicated region
  $region38: #{neural_conv3d_forward.1} parent=0 // pred_check
    _
  $region39: #{neural_conv3d_forward.1} parent=0 // pred_check_branch
    %1130 = sbr.rel (0) target = $region41
  $region40: #{neural_conv3d_forward.1} parent=0 // pred_region
    _
  $region41: #{neural_conv3d_forward.1} parent=0 // pred_fallthru
    _
  // Predicated region
  $region42: #{neural_conv3d_forward.1} parent=0 // pred_check
    _
  $region43: #{neural_conv3d_forward.1} parent=0 // pred_check_branch
    %1132 = sbr.rel (0) target = $region45
  $region44: #{neural_conv3d_forward.1} parent=0 // pred_region
    _
  $region45: #{neural_conv3d_forward.1} parent=0 // pred_fallthru
    _

</llo_original>
